<compile_context>
chip_gen: v6e
topology: v6e:2x2x1
jax: 0.10.0
libtpu: 0.0.40
codegen_flags: <defaults>
</compile_context>

<pallas_src>
import functools

import jax
import jax.numpy as jnp
import numpy as np
from jax.experimental import pallas as pl
from jax.experimental.pallas import tpu as pltpu


# ----------------------------- in-kernel helpers -----------------------------

def _layer_norm(y, gamma, beta, eps=1e-5):
    mu = jnp.mean(y, axis=-1, keepdims=True)
    var = jnp.mean((y - mu) ** 2, axis=-1, keepdims=True)
    return (y - mu) * jax.lax.rsqrt(var + eps) * gamma + beta


# ----------------------------- fused encoder-layer kernel --------------------

def _encoder_kernel(n_head, d_k, d_v, inv_temp, with_attn,
                    x_ref, mask_ref, npm_ref,
                    wq_ref, bq_ref, wk_ref, bk_ref, wv_ref, bv_ref,
                    wfc_ref, bfc_ref, ln1g_ref, ln1b_ref,
                    w1_ref, b1_ref, w2_ref, b2_ref, ln2g_ref, ln2b_ref,
                    out_ref, *attn_refs):
    x = x_ref[0]                           # (L, d_model) f32, residual / q=k=v input
    mask = mask_ref[0]                     # (L, L) float, 1.0 => masked
    npm = npm_ref[0]                       # (L, 1)
    L, _ = x.shape
    bf16 = jnp.bfloat16

    xb = x.astype(bf16)

    # fused QKV projections: bf16 operands, f32 accumulation on the MXU
    q = jnp.dot(xb, wq_ref[...], preferred_element_type=jnp.float32) + bq_ref[...]
    k = jnp.dot(xb, wk_ref[...], preferred_element_type=jnp.float32) + bk_ref[...]
    v = jnp.dot(xb, wv_ref[...], preferred_element_type=jnp.float32) + bv_ref[...]
    q = q * inv_temp                       # pre-scale q instead of dividing (L,L) scores

    # gather heads into a leading batch dim (lane slices + leading-dim stack only;
    # the actual matmuls below are single batched contractions, no per-head matmul loop)
    qh = jnp.stack([q[:, h * d_k:(h + 1) * d_k] for h in range(n_head)], axis=0)
    kh = jnp.stack([k[:, h * d_k:(h + 1) * d_k] for h in range(n_head)], axis=0)
    vh = jnp.stack([v[:, h * d_v:(h + 1) * d_v] for h in range(n_head)], axis=0)
    qh = qh.astype(bf16)                   # (H, L, d_k)
    kh = kh.astype(bf16)                   # (H, L, d_k)
    vh = vh.astype(bf16)                   # (H, L, d_v)

    # scores for all heads at once
    s = jnp.einsum("hqd,hkd->hqk", qh, kh,
                   preferred_element_type=jnp.float32)        # (H, L, L) f32
    s = jnp.where(mask[None] > 0.5, -1e30, s)   # finite fill: no NaN on fully-masked rows

    # softmax over keys (f32); reciprocal on the EUP
    s_max = jnp.max(s, axis=-1, keepdims=True)
    e = jnp.exp(s - s_max)
    p = e * pl.reciprocal(jnp.sum(e, axis=-1, keepdims=True), approx=True)

    if with_attn:
        attn_refs[0][...] = p[:, None]     # (H, 1, L, L) block

    # attention-weighted values, all heads at once
    o_heads = jnp.einsum("hqk,hkd->hqd", p.astype(bf16), vh,
                         preferred_element_type=jnp.float32)  # (H, L, d_v) f32
    o_cat = jnp.concatenate([o_heads[h] for h in range(n_head)], axis=-1)  # (L, H*d_v)

    # output projection + residual + LayerNorm (f32)
    o = jnp.dot(o_cat.astype(bf16), wfc_ref[...],
                preferred_element_type=jnp.float32) + bfc_ref[...]
    y = _layer_norm(o + x, ln1g_ref[...], ln1b_ref[...])

    # enc_output *= non_pad_mask, then position-wise FFN (fused, no HBM round trip)
    y = y * npm
    h = jnp.maximum(
        jnp.dot(y.astype(bf16), w1_ref[...],
                preferred_element_type=jnp.float32) + b1_ref[...], 0.0)
    o2 = jnp.dot(h.astype(bf16), w2_ref[...],
                 preferred_element_type=jnp.float32) + b2_ref[...]
    z = _layer_norm(o2 + y, ln2g_ref[...], ln2b_ref[...])
    out_ref[0] = z * npm                   # enc_output *= non_pad_mask (post-FFN)


def encoder_layer(enc_input, non_pad_mask, slf_attn_mask, params,
                  n_head, d_k, d_v, return_attn=True):
    B, L, d_model = enc_input.shape
    inv_temp = float(1.0 / np.sqrt(d_k))
    bf16 = jnp.bfloat16

    kernel = functools.partial(_encoder_kernel, n_head, d_k, d_v, inv_temp, return_attn)

    # weights in bf16 (halves weight DMA / VMEM); biases and LayerNorm params stay f32
    weight_args = (
        params["wq"].astype(bf16), params["bq"],
        params["wk"].astype(bf16), params["bk"],
        params["wv"].astype(bf16), params["bv"],
        params["wfc"].astype(bf16), params["bfc"],
        params["ln1_g"], params["ln1_b"],
        params["w1"].astype(bf16), params["b1"],
        params["w2"].astype(bf16), params["b2"],
        params["ln2_g"], params["ln2_b"],
    )

    in_specs = [
        pl.BlockSpec((1, L, d_model), lambda b: (b, 0, 0)),   # enc_input
        pl.BlockSpec((1, L, L), lambda b: (b, 0, 0)),          # slf_attn_mask
        pl.BlockSpec((1, L, 1), lambda b: (b, 0, 0)),          # non_pad_mask
    ] + [pl.BlockSpec(w.shape, lambda b: (0, 0)) for w in weight_args]

    if return_attn:
        out_shape = (jax.ShapeDtypeStruct((B, L, d_model), jnp.float32),
                     jax.ShapeDtypeStruct((n_head, B, L, L), jnp.float32))
        out_specs = (pl.BlockSpec((1, L, d_model), lambda b: (b, 0, 0)),
                     pl.BlockSpec((n_head, 1, L, L), lambda b: (0, b, 0, 0)))
    else:
        out_shape = jax.ShapeDtypeStruct((B, L, d_model), jnp.float32)
        out_specs = pl.BlockSpec((1, L, d_model), lambda b: (b, 0, 0))

    result = pl.pallas_call(
        kernel,
        out_shape=out_shape,
        grid=(B,),
        in_specs=in_specs,
        out_specs=out_specs,
        compiler_params=pltpu.CompilerParams(
            dimension_semantics=("parallel",),        # batches are independent
            vmem_limit_bytes=32 * 1024 * 1024),
    )(enc_input, slf_attn_mask, non_pad_mask, *weight_args)

    if return_attn:
        enc_out, attn = result
        # torch stacks heads as (n_head * B, L, L) with index = h * B + b
        return enc_out, attn.reshape(n_head * B, L, L)
    return result, None


# ----------------------------- pure-JAX reference ------------------------------

def _ln_ref(y, g, b, eps=1e-5):
    mu = jnp.mean(y, axis=-1, keepdims=True)
    var = jnp.mean((y - mu) ** 2, axis=-1, keepdims=True)
    return (y - mu) / jnp.sqrt(var + eps) * g + b


def encoder_layer_ref(x, non_pad_mask, slf_attn_mask, params, n_head, d_k, d_v):
    B, L, d_model = x.shape
    hp = jax.lax.Precision.HIGHEST
    residual = x
    q = jnp.dot(x, params["wq"], precision=hp) + params["bq"][0]
    k = jnp.dot(x, params["wk"], precision=hp) + params["bk"][0]
    v = jnp.dot(x, params["wv"], precision=hp) + params["bv"][0]
    q = q.reshape(B, L, n_head, d_k).transpose(2, 0, 1, 3).reshape(-1, L, d_k)
    k = k.reshape(B, L, n_head, d_k).transpose(2, 0, 1, 3).reshape(-1, L, d_k)
    v = v.reshape(B, L, n_head, d_v).transpose(2, 0, 1, 3).reshape(-1, L, d_v)
    mask = jnp.tile(slf_attn_mask, (n_head, 1, 1))
    attn = jnp.einsum("bij,bkj->bik", q, k, precision=hp) / np.sqrt(d_k)
    attn = jnp.where(mask > 0.5, -jnp.inf, attn)
    attn = jax.nn.softmax(attn, axis=2)
    out = jnp.einsum("bik,bkj->bij", attn, v, precision=hp)
    out = out.reshape(n_head, B, L, d_v).transpose(1, 2, 0, 3).reshape(B, L, -1)
    out = jnp.dot(out, params["wfc"], precision=hp) + params["bfc"][0]
    out = _ln_ref(out + residual, params["ln1_g"][0], params["ln1_b"][0])
    out = out * non_pad_mask
    residual = out
    h = jax.nn.relu(jnp.dot(out, params["w1"], precision=hp) + params["b1"][0])
    o = jnp.dot(h, params["w2"], precision=hp) + params["b2"][0]
    o = _ln_ref(o + residual, params["ln2_g"][0], params["ln2_b"][0])
    o = o * non_pad_mask
    return o, attn


# ----------------------------- parameter init ----------------------------------

def init_params(key, d_model, d_inner, n_head, d_k, d_v):
    ks = jax.random.split(key, 12)
    std_qk = np.sqrt(2.0 / (d_model + d_k))
    std_v = np.sqrt(2.0 / (d_model + d_v))
    std_fc = np.sqrt(2.0 / (n_head * d_v + d_model))   # xavier normal
    f32 = jnp.float32
    return dict(
        wq=(std_qk * jax.random.normal(ks[0], (d_model, n_head * d_k))).astype(f32),
        bq=(0.02 * jax.random.normal(ks[1], (1, n_head * d_k))).astype(f32),
        wk=(std_qk * jax.random.normal(ks[2], (d_model, n_head * d_k))).astype(f32),
        bk=(0.02 * jax.random.normal(ks[3], (1, n_head * d_k))).astype(f32),
        wv=(std_v * jax.random.normal(ks[4], (d_model, n_head * d_v))).astype(f32),
        bv=(0.02 * jax.random.normal(ks[5], (1, n_head * d_v))).astype(f32),
        wfc=(std_fc * jax.random.normal(ks[6], (n_head * d_v, d_model))).astype(f32),
        bfc=(0.02 * jax.random.normal(ks[7], (1, d_model))).astype(f32),
        ln1_g=jnp.ones((1, d_model), f32),
        ln1_b=jnp.zeros((1, d_model), f32),
        # 1x1 Conv1d == dense over the channel dim; stored as (in, out)
        w1=(np.sqrt(1.0 / d_model) * jax.random.normal(ks[8], (d_model, d_inner))).astype(f32),
        b1=(0.02 * jax.random.normal(ks[9], (1, d_inner))).astype(f32),
        w2=(np.sqrt(1.0 / d_inner) * jax.random.normal(ks[10], (d_inner, d_model))).astype(f32),
        b2=(0.02 * jax.random.normal(ks[11], (1, d_model))).astype(f32),
        ln2_g=jnp.ones((1, d_model), f32),
        ln2_b=jnp.zeros((1, d_model), f32),
    )


# ----------------------------- main ---------------------------------------------

if __name__ == "__main__":
    B, L = 2, 8
    d_model, d_inner = 32, 64
    n_head, d_k, d_v = 4, 8, 8

    key = jax.random.PRNGKey(0)
    k_x, k_p = jax.random.split(key)
    x = jax.random.normal(k_x, (B, L, d_model), dtype=jnp.float32)
    params = init_params(k_p, d_model, d_inner, n_head, d_k, d_v)

    # key-padding style masks: batch 0 has full length L, batch 1 has length L-2
    lengths = np.array([L, L - 2])
    pos = np.arange(L)
    non_pad = (pos[None, :] < lengths[:, None]).astype(np.float32)      # (B, L)
    non_pad_mask = jnp.asarray(non_pad[:, :, None])                     # (B, L, 1)
    slf_attn_mask = jnp.asarray(
        np.broadcast_to((pos[None, None, :] >= lengths[:, None, None]),
                        (B, L, L)).astype(np.float32))                  # (B, L, L)

    enc_out, enc_attn = encoder_layer(
        x, non_pad_mask, slf_attn_mask, params, n_head, d_k, d_v, return_attn=True)
    jax.block_until_ready(enc_out)
    jax.block_until_ready(enc_attn)

    # output-only path (skips the n_head*B*L^2 attention-probability HBM write)
    enc_out_only, _ = encoder_layer(
        x, non_pad_mask, slf_attn_mask, params, n_head, d_k, d_v, return_attn=False)
    jax.block_until_ready(enc_out_only)

    ref_out, ref_attn = encoder_layer_ref(
        x, non_pad_mask, slf_attn_mask, params, n_head, d_k, d_v)

    # tolerances account for bf16 matmul operands vs. f32 HIGHEST-precision reference
    np.testing.assert_allclose(np.asarray(enc_attn), np.asarray(ref_attn),
                               rtol=2e-2, atol=2e-2)
    np.testing.assert_allclose(np.asarray(enc_out), np.asarray(ref_out),
                               rtol=3e-2, atol=3e-2)
    np.testing.assert_allclose(np.asarray(enc_out_only), np.asarray(ref_out),
                               rtol=3e-2, atol=3e-2)

    print("KERNEL_OK")
</pallas_src>

<mosaic_0001>
module attributes {stable_mosaic.version = 11 : i64} {
  func.func @_encoder_kernel(%arg0: i32, %arg1: memref<1x8x32xf32, #tpu.memory_space<vmem>>, %arg2: memref<1x8x8xf32, #tpu.memory_space<vmem>>, %arg3: memref<1x8x1xf32, #tpu.memory_space<vmem>>, %arg4: memref<32x32xbf16, #tpu.memory_space<vmem>>, %arg5: memref<1x32xf32, #tpu.memory_space<vmem>>, %arg6: memref<32x32xbf16, #tpu.memory_space<vmem>>, %arg7: memref<1x32xf32, #tpu.memory_space<vmem>>, %arg8: memref<32x32xbf16, #tpu.memory_space<vmem>>, %arg9: memref<1x32xf32, #tpu.memory_space<vmem>>, %arg10: memref<32x32xbf16, #tpu.memory_space<vmem>>, %arg11: memref<1x32xf32, #tpu.memory_space<vmem>>, %arg12: memref<1x32xf32, #tpu.memory_space<vmem>>, %arg13: memref<1x32xf32, #tpu.memory_space<vmem>>, %arg14: memref<32x64xbf16, #tpu.memory_space<vmem>>, %arg15: memref<1x64xf32, #tpu.memory_space<vmem>>, %arg16: memref<64x32xbf16, #tpu.memory_space<vmem>>, %arg17: memref<1x32xf32, #tpu.memory_space<vmem>>, %arg18: memref<1x32xf32, #tpu.memory_space<vmem>>, %arg19: memref<1x32xf32, #tpu.memory_space<vmem>>, %arg20: memref<1x8x32xf32, #tpu.memory_space<vmem>>, %arg21: memref<4x1x8x8xf32, #tpu.memory_space<vmem>>) attributes {dimension_semantics = [#tpu.dimension_semantics<parallel>], iteration_bounds = array<i64: 2>, scalar_prefetch = 0 : i64, scratch_operands = 0 : i64, tpu.core_type = #tpu.core_type<tc>, window_params = [{transform_indices = @transform_0, window_bounds = array<i64: 1, 8, 32>}, {transform_indices = @transform_1, window_bounds = array<i64: 1, 8, 8>}, {transform_indices = @transform_2, window_bounds = array<i64: 1, 8, 1>}, {pipeline_mode = #tpu.pipeline_mode<synchronous>, transform_indices = @transform_3, window_bounds = array<i64: 32, 32>}, {pipeline_mode = #tpu.pipeline_mode<synchronous>, transform_indices = @transform_4, window_bounds = array<i64: 1, 32>}, {pipeline_mode = #tpu.pipeline_mode<synchronous>, transform_indices = @transform_5, window_bounds = array<i64: 32, 32>}, {pipeline_mode = #tpu.pipeline_mode<synchronous>, transform_indices = @transform_6, window_bounds = array<i64: 1, 32>}, {pipeline_mode = #tpu.pipeline_mode<synchronous>, transform_indices = @transform_7, window_bounds = array<i64: 32, 32>}, {pipeline_mode = #tpu.pipeline_mode<synchronous>, transform_indices = @transform_8, window_bounds = array<i64: 1, 32>}, {pipeline_mode = #tpu.pipeline_mode<synchronous>, transform_indices = @transform_9, window_bounds = array<i64: 32, 32>}, {pipeline_mode = #tpu.pipeline_mode<synchronous>, transform_indices = @transform_10, window_bounds = array<i64: 1, 32>}, {pipeline_mode = #tpu.pipeline_mode<synchronous>, transform_indices = @transform_11, window_bounds = array<i64: 1, 32>}, {pipeline_mode = #tpu.pipeline_mode<synchronous>, transform_indices = @transform_12, window_bounds = array<i64: 1, 32>}, {pipeline_mode = #tpu.pipeline_mode<synchronous>, transform_indices = @transform_13, window_bounds = array<i64: 32, 64>}, {pipeline_mode = #tpu.pipeline_mode<synchronous>, transform_indices = @transform_14, window_bounds = array<i64: 1, 64>}, {pipeline_mode = #tpu.pipeline_mode<synchronous>, transform_indices = @transform_15, window_bounds = array<i64: 64, 32>}, {pipeline_mode = #tpu.pipeline_mode<synchronous>, transform_indices = @transform_16, window_bounds = array<i64: 1, 32>}, {pipeline_mode = #tpu.pipeline_mode<synchronous>, transform_indices = @transform_17, window_bounds = array<i64: 1, 32>}, {pipeline_mode = #tpu.pipeline_mode<synchronous>, transform_indices = @transform_18, window_bounds = array<i64: 1, 32>}, {transform_indices = @transform_19, window_bounds = array<i64: 1, 8, 32>}, {transform_indices = @transform_20, window_bounds = array<i64: 4, 1, 8, 8>}]} {
    %c0 = arith.constant 0 : index
    %c0_0 = arith.constant 0 : index
    %c0_1 = arith.constant 0 : index
    %0 = vector.load %arg1[%c0, %c0_0, %c0_1] : memref<1x8x32xf32, #tpu.memory_space<vmem>>, vector<1x8x32xf32>
    %1 = vector.shape_cast %0 : vector<1x8x32xf32> to vector<8x32xf32>
    %c0_2 = arith.constant 0 : index
    %c0_3 = arith.constant 0 : index
    %c0_4 = arith.constant 0 : index
    %2 = vector.load %arg2[%c0_2, %c0_3, %c0_4] : memref<1x8x8xf32, #tpu.memory_space<vmem>>, vector<1x8x8xf32>
    %3 = vector.shape_cast %2 : vector<1x8x8xf32> to vector<8x8xf32>
    %c0_5 = arith.constant 0 : index
    %c0_6 = arith.constant 0 : index
    %c0_7 = arith.constant 0 : index
    %4 = vector.load %arg3[%c0_5, %c0_6, %c0_7] : memref<1x8x1xf32, #tpu.memory_space<vmem>>, vector<1x8x1xf32>
    %5 = vector.shape_cast %4 : vector<1x8x1xf32> to vector<8x1xf32>
    %6 = arith.truncf %1 : vector<8x32xf32> to vector<8x32xbf16>
    %c0_8 = arith.constant 0 : index
    %c0_9 = arith.constant 0 : index
    %7 = vector.load %arg4[%c0_8, %c0_9] : memref<32x32xbf16, #tpu.memory_space<vmem>>, vector<32x32xbf16>
    %cst = arith.constant dense<0.000000e+00> : vector<8x32xf32>
    %8 = tpu.matmul %6, %7, %cst {dimension_numbers = #tpu.dot_dimension_numbers<[1], [0], [0], [1], [0, 0, 1, 1], [], []>} : vector<8x32xbf16>, vector<32x32xbf16>, vector<8x32xf32> -> vector<8x32xf32>
    %c0_10 = arith.constant 0 : index
    %c0_11 = arith.constant 0 : index
    %9 = vector.load %arg5[%c0_10, %c0_11] : memref<1x32xf32, #tpu.memory_space<vmem>>, vector<1x32xf32>
    %10 = vector.broadcast %9 : vector<1x32xf32> to vector<8x32xf32>
    %11 = arith.addf %8, %10 : vector<8x32xf32>
    %c0_12 = arith.constant 0 : index
    %c0_13 = arith.constant 0 : index
    %12 = vector.load %arg6[%c0_12, %c0_13] : memref<32x32xbf16, #tpu.memory_space<vmem>>, vector<32x32xbf16>
    %cst_14 = arith.constant dense<0.000000e+00> : vector<8x32xf32>
    %13 = tpu.matmul %6, %12, %cst_14 {dimension_numbers = #tpu.dot_dimension_numbers<[1], [0], [0], [1], [0, 0, 1, 1], [], []>} : vector<8x32xbf16>, vector<32x32xbf16>, vector<8x32xf32> -> vector<8x32xf32>
    %c0_15 = arith.constant 0 : index
    %c0_16 = arith.constant 0 : index
    %14 = vector.load %arg7[%c0_15, %c0_16] : memref<1x32xf32, #tpu.memory_space<vmem>>, vector<1x32xf32>
    %15 = vector.broadcast %14 : vector<1x32xf32> to vector<8x32xf32>
    %16 = arith.addf %13, %15 : vector<8x32xf32>
    %c0_17 = arith.constant 0 : index
    %c0_18 = arith.constant 0 : index
    %17 = vector.load %arg8[%c0_17, %c0_18] : memref<32x32xbf16, #tpu.memory_space<vmem>>, vector<32x32xbf16>
    %cst_19 = arith.constant dense<0.000000e+00> : vector<8x32xf32>
    %18 = tpu.matmul %6, %17, %cst_19 {dimension_numbers = #tpu.dot_dimension_numbers<[1], [0], [0], [1], [0, 0, 1, 1], [], []>} : vector<8x32xbf16>, vector<32x32xbf16>, vector<8x32xf32> -> vector<8x32xf32>
    %c0_20 = arith.constant 0 : index
    %c0_21 = arith.constant 0 : index
    %19 = vector.load %arg9[%c0_20, %c0_21] : memref<1x32xf32, #tpu.memory_space<vmem>>, vector<1x32xf32>
    %20 = vector.broadcast %19 : vector<1x32xf32> to vector<8x32xf32>
    %21 = arith.addf %18, %20 : vector<8x32xf32>
    %cst_22 = arith.constant 0.353553385 : f32
    %22 = vector.broadcast %cst_22 : f32 to vector<8x32xf32>
    %23 = arith.mulf %11, %22 : vector<8x32xf32>
    %24 = vector.extract_strided_slice %23 {offsets = [0, 0], sizes = [8, 8], strides = [1, 1]} : vector<8x32xf32> to vector<8x8xf32>
    %25 = vector.extract_strided_slice %23 {offsets = [0, 8], sizes = [8, 8], strides = [1, 1]} : vector<8x32xf32> to vector<8x8xf32>
    %26 = vector.extract_strided_slice %23 {offsets = [0, 16], sizes = [8, 8], strides = [1, 1]} : vector<8x32xf32> to vector<8x8xf32>
    %27 = vector.extract_strided_slice %23 {offsets = [0, 24], sizes = [8, 8], strides = [1, 1]} : vector<8x32xf32> to vector<8x8xf32>
    %28 = vector.shape_cast %24 : vector<8x8xf32> to vector<1x8x8xf32>
    %29 = vector.shape_cast %25 : vector<8x8xf32> to vector<1x8x8xf32>
    %30 = vector.shape_cast %26 : vector<8x8xf32> to vector<1x8x8xf32>
    %31 = vector.shape_cast %27 : vector<8x8xf32> to vector<1x8x8xf32>
    %32 = tpu.concatenate %28, %29, %30, %31 in 0 : vector<1x8x8xf32>, vector<1x8x8xf32>, vector<1x8x8xf32>, vector<1x8x8xf32> -> vector<4x8x8xf32>
    %33 = vector.extract_strided_slice %16 {offsets = [0, 0], sizes = [8, 8], strides = [1, 1]} : vector<8x32xf32> to vector<8x8xf32>
    %34 = vector.extract_strided_slice %16 {offsets = [0, 8], sizes = [8, 8], strides = [1, 1]} : vector<8x32xf32> to vector<8x8xf32>
    %35 = vector.extract_strided_slice %16 {offsets = [0, 16], sizes = [8, 8], strides = [1, 1]} : vector<8x32xf32> to vector<8x8xf32>
    %36 = vector.extract_strided_slice %16 {offsets = [0, 24], sizes = [8, 8], strides = [1, 1]} : vector<8x32xf32> to vector<8x8xf32>
    %37 = vector.shape_cast %33 : vector<8x8xf32> to vector<1x8x8xf32>
    %38 = vector.shape_cast %34 : vector<8x8xf32> to vector<1x8x8xf32>
    %39 = vector.shape_cast %35 : vector<8x8xf32> to vector<1x8x8xf32>
    %40 = vector.shape_cast %36 : vector<8x8xf32> to vector<1x8x8xf32>
    %41 = tpu.concatenate %37, %38, %39, %40 in 0 : vector<1x8x8xf32>, vector<1x8x8xf32>, vector<1x8x8xf32>, vector<1x8x8xf32> -> vector<4x8x8xf32>
    %42 = vector.extract_strided_slice %21 {offsets = [0, 0], sizes = [8, 8], strides = [1, 1]} : vector<8x32xf32> to vector<8x8xf32>
    %43 = vector.extract_strided_slice %21 {offsets = [0, 8], sizes = [8, 8], strides = [1, 1]} : vector<8x32xf32> to vector<8x8xf32>
    %44 = vector.extract_strided_slice %21 {offsets = [0, 16], sizes = [8, 8], strides = [1, 1]} : vector<8x32xf32> to vector<8x8xf32>
    %45 = vector.extract_strided_slice %21 {offsets = [0, 24], sizes = [8, 8], strides = [1, 1]} : vector<8x32xf32> to vector<8x8xf32>
    %46 = vector.shape_cast %42 : vector<8x8xf32> to vector<1x8x8xf32>
    %47 = vector.shape_cast %43 : vector<8x8xf32> to vector<1x8x8xf32>
    %48 = vector.shape_cast %44 : vector<8x8xf32> to vector<1x8x8xf32>
    %49 = vector.shape_cast %45 : vector<8x8xf32> to vector<1x8x8xf32>
    %50 = tpu.concatenate %46, %47, %48, %49 in 0 : vector<1x8x8xf32>, vector<1x8x8xf32>, vector<1x8x8xf32>, vector<1x8x8xf32> -> vector<4x8x8xf32>
    %51 = arith.truncf %32 : vector<4x8x8xf32> to vector<4x8x8xbf16>
    %52 = arith.truncf %41 : vector<4x8x8xf32> to vector<4x8x8xbf16>
    %53 = arith.truncf %50 : vector<4x8x8xf32> to vector<4x8x8xbf16>
    "tpu.trace_start"() <{level = 10 : i32, message = "hqd,hkd->hqk"}> : () -> ()
    %cst_23 = arith.constant dense<0.000000e+00> : vector<4x8x8xf32>
    %54 = tpu.matmul %51, %52, %cst_23 {dimension_numbers = #tpu.dot_dimension_numbers<[2], [2], [1], [1], [0, 0, 0, 1, 1, 1], [0], [0]>} : vector<4x8x8xbf16>, vector<4x8x8xbf16>, vector<4x8x8xf32> -> vector<4x8x8xf32>
    "tpu.trace_stop"() : () -> ()
    %55 = vector.shape_cast %3 : vector<8x8xf32> to vector<1x8x8xf32>
    %cst_24 = arith.constant 5.000000e-01 : f32
    %56 = vector.broadcast %cst_24 : f32 to vector<1x8x8xf32>
    %57 = arith.cmpf ogt, %55, %56 : vector<1x8x8xf32>
    %cst_25 = arith.constant -1.000000e+30 : f32
    %58 = vector.shape_cast %57 : vector<1x8x8xi1> to vector<1x8x8xi1>
    %59 = vector.broadcast %58 : vector<1x8x8xi1> to vector<4x8x8xi1>
    %60 = vector.broadcast %cst_25 : f32 to vector<4x8x8xf32>
    %61 = arith.select %59, %60, %54 : vector<4x8x8xi1>, vector<4x8x8xf32>
    %cst_26 = arith.constant dense<0xFF800000> : vector<4x8xf32>
    %62 = vector.multi_reduction <maximumf>, %61, %cst_26 [2] : vector<4x8x8xf32> to vector<4x8xf32>
    %63 = vector.shape_cast %62 : vector<4x8xf32> to vector<4x8x1xf32>
    %64 = vector.broadcast %63 : vector<4x8x1xf32> to vector<4x8x8xf32>
    %65 = arith.subf %61, %64 : vector<4x8x8xf32>
    %66 = math.exp %65 : vector<4x8x8xf32>
    %cst_27 = arith.constant dense<0.000000e+00> : vector<4x8xf32>
    %67 = vector.multi_reduction <add>, %66, %cst_27 [2] : vector<4x8x8xf32> to vector<4x8xf32>
    %68 = vector.shape_cast %67 : vector<4x8xf32> to vector<4x8x1xf32>
    %69 = tpu.reciprocal %68 {approx = true} : vector<4x8x1xf32> -> vector<4x8x1xf32>
    %70 = vector.broadcast %69 : vector<4x8x1xf32> to vector<4x8x8xf32>
    %71 = arith.mulf %66, %70 : vector<4x8x8xf32>
    %72 = vector.shape_cast %71 : vector<4x8x8xf32> to vector<4x1x8x8xf32>
    %c0_28 = arith.constant 0 : index
    %c0_29 = arith.constant 0 : index
    %c0_30 = arith.constant 0 : index
    %c0_31 = arith.constant 0 : index
    %73 = vector.load %arg21[%c0_28, %c0_29, %c0_30, %c0_31] : memref<4x1x8x8xf32, #tpu.memory_space<vmem>>, vector<4x1x8x8xf32>
    tpu.vector_store %arg21[%c0_28, %c0_29, %c0_30, %c0_31], %72 {strides = array<i32>} : memref<4x1x8x8xf32, #tpu.memory_space<vmem>>, vector<4x1x8x8xf32>,
    %74 = arith.truncf %71 : vector<4x8x8xf32> to vector<4x8x8xbf16>
    "tpu.trace_start"() <{level = 10 : i32, message = "hqk,hkd->hqd"}> : () -> ()
    %cst_32 = arith.constant dense<0.000000e+00> : vector<4x8x8xf32>
    %75 = tpu.matmul %74, %53, %cst_32 {dimension_numbers = #tpu.dot_dimension_numbers<[2], [1], [1], [2], [0, 0, 0, 1, 1, 2], [0], [0]>} : vector<4x8x8xbf16>, vector<4x8x8xbf16>, vector<4x8x8xf32> -> vector<4x8x8xf32>
    "tpu.trace_stop"() : () -> ()
    %76 = vector.extract_strided_slice %75 {offsets = [0, 0, 0], sizes = [1, 8, 8], strides = [1, 1, 1]} : vector<4x8x8xf32> to vector<1x8x8xf32>
    %77 = vector.shape_cast %76 : vector<1x8x8xf32> to vector<8x8xf32>
    %78 = vector.extract_strided_slice %75 {offsets = [1, 0, 0], sizes = [1, 8, 8], strides = [1, 1, 1]} : vector<4x8x8xf32> to vector<1x8x8xf32>
    %79 = vector.shape_cast %78 : vector<1x8x8xf32> to vector<8x8xf32>
    %80 = vector.extract_strided_slice %75 {offsets = [2, 0, 0], sizes = [1, 8, 8], strides = [1, 1, 1]} : vector<4x8x8xf32> to vector<1x8x8xf32>
    %81 = vector.shape_cast %80 : vector<1x8x8xf32> to vector<8x8xf32>
    %82 = vector.extract_strided_slice %75 {offsets = [3, 0, 0], sizes = [1, 8, 8], strides = [1, 1, 1]} : vector<4x8x8xf32> to vector<1x8x8xf32>
    %83 = vector.shape_cast %82 : vector<1x8x8xf32> to vector<8x8xf32>
    %84 = tpu.concatenate %77, %79, %81, %83 in 1 : vector<8x8xf32>, vector<8x8xf32>, vector<8x8xf32>, vector<8x8xf32> -> vector<8x32xf32>
    %85 = arith.truncf %84 : vector<8x32xf32> to vector<8x32xbf16>
    %c0_33 = arith.constant 0 : index
    %c0_34 = arith.constant 0 : index
    %86 = vector.load %arg10[%c0_33, %c0_34] : memref<32x32xbf16, #tpu.memory_space<vmem>>, vector<32x32xbf16>
    %cst_35 = arith.constant dense<0.000000e+00> : vector<8x32xf32>
    %87 = tpu.matmul %85, %86, %cst_35 {dimension_numbers = #tpu.dot_dimension_numbers<[1], [0], [0], [1], [0, 0, 1, 1], [], []>} : vector<8x32xbf16>, vector<32x32xbf16>, vector<8x32xf32> -> vector<8x32xf32>
    %c0_36 = arith.constant 0 : index
    %c0_37 = arith.constant 0 : index
    %88 = vector.load %arg11[%c0_36, %c0_37] : memref<1x32xf32, #tpu.memory_space<vmem>>, vector<1x32xf32>
    %89 = vector.broadcast %88 : vector<1x32xf32> to vector<8x32xf32>
    %90 = arith.addf %87, %89 : vector<8x32xf32>
    %91 = arith.addf %90, %1 : vector<8x32xf32>
    %c0_38 = arith.constant 0 : index
    %c0_39 = arith.constant 0 : index
    %92 = vector.load %arg12[%c0_38, %c0_39] : memref<1x32xf32, #tpu.memory_space<vmem>>, vector<1x32xf32>
    %c0_40 = arith.constant 0 : index
    %c0_41 = arith.constant 0 : index
    %93 = vector.load %arg13[%c0_40, %c0_41] : memref<1x32xf32, #tpu.memory_space<vmem>>, vector<1x32xf32>
    %cst_42 = arith.constant dense<0.000000e+00> : vector<8xf32>
    %94 = vector.multi_reduction <add>, %91, %cst_42 [1] : vector<8x32xf32> to vector<8xf32>
    %95 = vector.shape_cast %94 : vector<8xf32> to vector<8x1xf32>
    %cst_43 = arith.constant 3.200000e+01 : f32
    %96 = vector.broadcast %cst_43 : f32 to vector<8x1xf32>
    %97 = arith.divf %95, %96 : vector<8x1xf32>
    %98 = vector.broadcast %97 : vector<8x1xf32> to vector<8x32xf32>
    %99 = arith.subf %91, %98 : vector<8x32xf32>
    %100 = arith.mulf %99, %99 : vector<8x32xf32>
    %cst_44 = arith.constant dense<0.000000e+00> : vector<8xf32>
    %101 = vector.multi_reduction <add>, %100, %cst_44 [1] : vector<8x32xf32> to vector<8xf32>
    %102 = vector.shape_cast %101 : vector<8xf32> to vector<8x1xf32>
    %cst_45 = arith.constant 3.200000e+01 : f32
    %103 = vector.broadcast %cst_45 : f32 to vector<8x1xf32>
    %104 = arith.divf %102, %103 : vector<8x1xf32>
    %105 = vector.broadcast %97 : vector<8x1xf32> to vector<8x32xf32>
    %106 = arith.subf %91, %105 : vector<8x32xf32>
    %cst_46 = arith.constant 9.99999974E-6 : f32
    %107 = vector.broadcast %cst_46 : f32 to vector<8x1xf32>
    %108 = arith.addf %104, %107 : vector<8x1xf32>
    %109 = math.rsqrt %108 : vector<8x1xf32>
    %110 = vector.broadcast %109 : vector<8x1xf32> to vector<8x32xf32>
    %111 = arith.mulf %106, %110 : vector<8x32xf32>
    %112 = vector.broadcast %92 : vector<1x32xf32> to vector<8x32xf32>
    %113 = arith.mulf %111, %112 : vector<8x32xf32>
    %114 = vector.broadcast %93 : vector<1x32xf32> to vector<8x32xf32>
    %115 = arith.addf %113, %114 : vector<8x32xf32>
    %116 = vector.broadcast %5 : vector<8x1xf32> to vector<8x32xf32>
    %117 = arith.mulf %115, %116 : vector<8x32xf32>
    %118 = arith.truncf %117 : vector<8x32xf32> to vector<8x32xbf16>
    %c0_47 = arith.constant 0 : index
    %c0_48 = arith.constant 0 : index
    %119 = vector.load %arg14[%c0_47, %c0_48] : memref<32x64xbf16, #tpu.memory_space<vmem>>, vector<32x64xbf16>
    %cst_49 = arith.constant dense<0.000000e+00> : vector<8x64xf32>
    %120 = tpu.matmul %118, %119, %cst_49 {dimension_numbers = #tpu.dot_dimension_numbers<[1], [0], [0], [1], [0, 0, 1, 1], [], []>} : vector<8x32xbf16>, vector<32x64xbf16>, vector<8x64xf32> -> vector<8x64xf32>
    %c0_50 = arith.constant 0 : index
    %c0_51 = arith.constant 0 : index
    %121 = vector.load %arg15[%c0_50, %c0_51] : memref<1x64xf32, #tpu.memory_space<vmem>>, vector<1x64xf32>
    %122 = vector.broadcast %121 : vector<1x64xf32> to vector<8x64xf32>
    %123 = arith.addf %120, %122 : vector<8x64xf32>
    %cst_52 = arith.constant 0.000000e+00 : f32
    %124 = vector.broadcast %cst_52 : f32 to vector<8x64xf32>
    %125 = arith.maximumf %123, %124 : vector<8x64xf32>
    %126 = arith.truncf %125 : vector<8x64xf32> to vector<8x64xbf16>
    %c0_53 = arith.constant 0 : index
    %c0_54 = arith.constant 0 : index
    %127 = vector.load %arg16[%c0_53, %c0_54] : memref<64x32xbf16, #tpu.memory_space<vmem>>, vector<64x32xbf16>
    %cst_55 = arith.constant dense<0.000000e+00> : vector<8x32xf32>
    %128 = tpu.matmul %126, %127, %cst_55 {dimension_numbers = #tpu.dot_dimension_numbers<[1], [0], [0], [1], [0, 0, 1, 1], [], []>} : vector<8x64xbf16>, vector<64x32xbf16>, vector<8x32xf32> -> vector<8x32xf32>
    %c0_56 = arith.constant 0 : index
    %c0_57 = arith.constant 0 : index
    %129 = vector.load %arg17[%c0_56, %c0_57] : memref<1x32xf32, #tpu.memory_space<vmem>>, vector<1x32xf32>
    %130 = vector.broadcast %129 : vector<1x32xf32> to vector<8x32xf32>
    %131 = arith.addf %128, %130 : vector<8x32xf32>
    %132 = arith.addf %131, %117 : vector<8x32xf32>
    %c0_58 = arith.constant 0 : index
    %c0_59 = arith.constant 0 : index
    %133 = vector.load %arg18[%c0_58, %c0_59] : memref<1x32xf32, #tpu.memory_space<vmem>>, vector<1x32xf32>
    %c0_60 = arith.constant 0 : index
    %c0_61 = arith.constant 0 : index
    %134 = vector.load %arg19[%c0_60, %c0_61] : memref<1x32xf32, #tpu.memory_space<vmem>>, vector<1x32xf32>
    %cst_62 = arith.constant dense<0.000000e+00> : vector<8xf32>
    %135 = vector.multi_reduction <add>, %132, %cst_62 [1] : vector<8x32xf32> to vector<8xf32>
    %136 = vector.shape_cast %135 : vector<8xf32> to vector<8x1xf32>
    %cst_63 = arith.constant 3.200000e+01 : f32
    %137 = vector.broadcast %cst_63 : f32 to vector<8x1xf32>
    %138 = arith.divf %136, %137 : vector<8x1xf32>
    %139 = vector.broadcast %138 : vector<8x1xf32> to vector<8x32xf32>
    %140 = arith.subf %132, %139 : vector<8x32xf32>
    %141 = arith.mulf %140, %140 : vector<8x32xf32>
    %cst_64 = arith.constant dense<0.000000e+00> : vector<8xf32>
    %142 = vector.multi_reduction <add>, %141, %cst_64 [1] : vector<8x32xf32> to vector<8xf32>
    %143 = vector.shape_cast %142 : vector<8xf32> to vector<8x1xf32>
    %cst_65 = arith.constant 3.200000e+01 : f32
    %144 = vector.broadcast %cst_65 : f32 to vector<8x1xf32>
    %145 = arith.divf %143, %144 : vector<8x1xf32>
    %146 = vector.broadcast %138 : vector<8x1xf32> to vector<8x32xf32>
    %147 = arith.subf %132, %146 : vector<8x32xf32>
    %cst_66 = arith.constant 9.99999974E-6 : f32
    %148 = vector.broadcast %cst_66 : f32 to vector<8x1xf32>
    %149 = arith.addf %145, %148 : vector<8x1xf32>
    %150 = math.rsqrt %149 : vector<8x1xf32>
    %151 = vector.broadcast %150 : vector<8x1xf32> to vector<8x32xf32>
    %152 = arith.mulf %147, %151 : vector<8x32xf32>
    %153 = vector.broadcast %133 : vector<1x32xf32> to vector<8x32xf32>
    %154 = arith.mulf %152, %153 : vector<8x32xf32>
    %155 = vector.broadcast %134 : vector<1x32xf32> to vector<8x32xf32>
    %156 = arith.addf %154, %155 : vector<8x32xf32>
    %157 = vector.broadcast %5 : vector<8x1xf32> to vector<8x32xf32>
    %158 = arith.mulf %156, %157 : vector<8x32xf32>
    %c0_67 = arith.constant 0 : index
    %c0_68 = arith.constant 0 : index
    %c0_69 = arith.constant 0 : index
    %159 = vector.load %arg20[%c0_67, %c0_68, %c0_69] : memref<1x8x32xf32, #tpu.memory_space<vmem>>, vector<1x8x32xf32>
    %160 = vector.shape_cast %159 : vector<1x8x32xf32> to vector<8x32xf32>
    %161 = vector.shape_cast %158 : vector<8x32xf32> to vector<1x8x32xf32>
    tpu.vector_store %arg20[%c0_67, %c0_68, %c0_69], %161 {strides = array<i32>} : memref<1x8x32xf32, #tpu.memory_space<vmem>>, vector<1x8x32xf32>,
    return
  }
  func.func @transform_0(%arg0: i32) -> (i32, i32, i32) {
    %c0_i32 = arith.constant 0 : i32
    %c0_i32_0 = arith.constant 0 : i32
    %c0_i32_1 = arith.constant 0 : i32
    return %arg0, %c0_i32, %c0_i32_0 : i32, i32, i32
  }
  func.func @transform_1(%arg0: i32) -> (i32, i32, i32) {
    %c0_i32 = arith.constant 0 : i32
    %c0_i32_0 = arith.constant 0 : i32
    %c0_i32_1 = arith.constant 0 : i32
    return %arg0, %c0_i32, %c0_i32_0 : i32, i32, i32
  }
  func.func @transform_2(%arg0: i32) -> (i32, i32, i32) {
    %c0_i32 = arith.constant 0 : i32
    %c0_i32_0 = arith.constant 0 : i32
    %c0_i32_1 = arith.constant 0 : i32
    return %arg0, %c0_i32, %c0_i32_0 : i32, i32, i32
  }
  func.func @transform_3(%arg0: i32) -> (i32, i32) {
    %c0_i32 = arith.constant 0 : i32
    %c0_i32_0 = arith.constant 0 : i32
    %c0_i32_1 = arith.constant 0 : i32
    return %c0_i32, %c0_i32_0 : i32, i32
  }
  func.func @transform_4(%arg0: i32) -> (i32, i32) {
    %c0_i32 = arith.constant 0 : i32
    %c0_i32_0 = arith.constant 0 : i32
    %c0_i32_1 = arith.constant 0 : i32
    return %c0_i32, %c0_i32_0 : i32, i32
  }
  func.func @transform_5(%arg0: i32) -> (i32, i32) {
    %c0_i32 = arith.constant 0 : i32
    %c0_i32_0 = arith.constant 0 : i32
    %c0_i32_1 = arith.constant 0 : i32
    return %c0_i32, %c0_i32_0 : i32, i32
  }
  func.func @transform_6(%arg0: i32) -> (i32, i32) {
    %c0_i32 = arith.constant 0 : i32
    %c0_i32_0 = arith.constant 0 : i32
    %c0_i32_1 = arith.constant 0 : i32
    return %c0_i32, %c0_i32_0 : i32, i32
  }
  func.func @transform_7(%arg0: i32) -> (i32, i32) {
    %c0_i32 = arith.constant 0 : i32
    %c0_i32_0 = arith.constant 0 : i32
    %c0_i32_1 = arith.constant 0 : i32
    return %c0_i32, %c0_i32_0 : i32, i32
  }
  func.func @transform_8(%arg0: i32) -> (i32, i32) {
    %c0_i32 = arith.constant 0 : i32
    %c0_i32_0 = arith.constant 0 : i32
    %c0_i32_1 = arith.constant 0 : i32
    return %c0_i32, %c0_i32_0 : i32, i32
  }
  func.func @transform_9(%arg0: i32) -> (i32, i32) {
    %c0_i32 = arith.constant 0 : i32
    %c0_i32_0 = arith.constant 0 : i32
    %c0_i32_1 = arith.constant 0 : i32
    return %c0_i32, %c0_i32_0 : i32, i32
  }
  func.func @transform_10(%arg0: i32) -> (i32, i32) {
    %c0_i32 = arith.constant 0 : i32
    %c0_i32_0 = arith.constant 0 : i32
    %c0_i32_1 = arith.constant 0 : i32
    return %c0_i32, %c0_i32_0 : i32, i32
  }
  func.func @transform_11(%arg0: i32) -> (i32, i32) {
    %c0_i32 = arith.constant 0 : i32
    %c0_i32_0 = arith.constant 0 : i32
    %c0_i32_1 = arith.constant 0 : i32
    return %c0_i32, %c0_i32_0 : i32, i32
  }
  func.func @transform_12(%arg0: i32) -> (i32, i32) {
    %c0_i32 = arith.constant 0 : i32
    %c0_i32_0 = arith.constant 0 : i32
    %c0_i32_1 = arith.constant 0 : i32
    return %c0_i32, %c0_i32_0 : i32, i32
  }
  func.func @transform_13(%arg0: i32) -> (i32, i32) {
    %c0_i32 = arith.constant 0 : i32
    %c0_i32_0 = arith.constant 0 : i32
    %c0_i32_1 = arith.constant 0 : i32
    return %c0_i32, %c0_i32_0 : i32, i32
  }
  func.func @transform_14(%arg0: i32) -> (i32, i32) {
    %c0_i32 = arith.constant 0 : i32
    %c0_i32_0 = arith.constant 0 : i32
    %c0_i32_1 = arith.constant 0 : i32
    return %c0_i32, %c0_i32_0 : i32, i32
  }
  func.func @transform_15(%arg0: i32) -> (i32, i32) {
    %c0_i32 = arith.constant 0 : i32
    %c0_i32_0 = arith.constant 0 : i32
    %c0_i32_1 = arith.constant 0 : i32
    return %c0_i32, %c0_i32_0 : i32, i32
  }
  func.func @transform_16(%arg0: i32) -> (i32, i32) {
    %c0_i32 = arith.constant 0 : i32
    %c0_i32_0 = arith.constant 0 : i32
    %c0_i32_1 = arith.constant 0 : i32
    return %c0_i32, %c0_i32_0 : i32, i32
  }
  func.func @transform_17(%arg0: i32) -> (i32, i32) {
    %c0_i32 = arith.constant 0 : i32
    %c0_i32_0 = arith.constant 0 : i32
    %c0_i32_1 = arith.constant 0 : i32
    return %c0_i32, %c0_i32_0 : i32, i32
  }
  func.func @transform_18(%arg0: i32) -> (i32, i32) {
    %c0_i32 = arith.constant 0 : i32
    %c0_i32_0 = arith.constant 0 : i32
    %c0_i32_1 = arith.constant 0 : i32
    return %c0_i32, %c0_i32_0 : i32, i32
  }
  func.func @transform_19(%arg0: i32) -> (i32, i32, i32) {
    %c0_i32 = arith.constant 0 : i32
    %c0_i32_0 = arith.constant 0 : i32
    %c0_i32_1 = arith.constant 0 : i32
    return %arg0, %c0_i32, %c0_i32_0 : i32, i32, i32
  }
  func.func @transform_20(%arg0: i32) -> (i32, i32, i32, i32) {
    %c0_i32 = arith.constant 0 : i32
    %c0_i32_0 = arith.constant 0 : i32
    %c0_i32_1 = arith.constant 0 : i32
    %c0_i32_2 = arith.constant 0 : i32
    return %c0_i32, %arg0, %c0_i32_0, %c0_i32_1 : i32, i32, i32, i32
  }
}

</mosaic_0001>

<llo_original>
// kernel: tpu_custom_call.1
$region0: #{tpu_custom_call.1}
  #allocation0 [shape = 'u32[]', space=smem, size = 0x4, offset = 0x4, fixed_abs, tag = 'smem constant byte address 0x4 - core index']
  #allocation1 [shape = 'u32[144,128]{1,0:T(1,128)}', space=vmem, size = 0x12000, scoped, tag = 'internal scratch']
  %s0 = inlined_call_operand.vmem [shape: f32[2,8,32], index: 0, kind: input, shape index: {}]
  %s1 = inlined_call_operand.vmem [shape: f32[2,8,8], index: 1, kind: input, shape index: {}]
  %s2 = inlined_call_operand.vmem [shape: f32[2,8,1], index: 2, kind: input, shape index: {}]
  %s3 = inlined_call_operand.vmem [shape: bf16[32,32], index: 3, kind: input, shape index: {}]
  %s4 = inlined_call_operand.hbm [shape: f32[1,32], index: 4, kind: input, shape index: {}]
  %s5 = inlined_call_operand.vmem [shape: bf16[32,32], index: 5, kind: input, shape index: {}]
  %s6 = inlined_call_operand.hbm [shape: f32[1,32], index: 6, kind: input, shape index: {}]
  %s7 = inlined_call_operand.hbm [shape: bf16[32,32], index: 7, kind: input, shape index: {}]
  %s8 = inlined_call_operand.hbm [shape: f32[1,32], index: 8, kind: input, shape index: {}]
  %s9 = inlined_call_operand.vmem [shape: bf16[32,32], index: 9, kind: input, shape index: {}]
  %s10 = inlined_call_operand.vmem [shape: f32[1,32], index: 10, kind: input, shape index: {}]
  %s11 = inlined_call_operand.vmem [shape: f32[1,32], index: 11, kind: input, shape index: {}]
  %s12 = inlined_call_operand.vmem [shape: f32[1,32], index: 12, kind: input, shape index: {}]
  %s13 = inlined_call_operand.hbm [shape: bf16[32,64], index: 13, kind: input, shape index: {}]
  %s14 = inlined_call_operand.vmem [shape: f32[1,64], index: 14, kind: input, shape index: {}]
  %s15 = inlined_call_operand.vmem [shape: bf16[64,32], index: 15, kind: input, shape index: {}]
  %s16 = inlined_call_operand.vmem [shape: f32[1,32], index: 16, kind: input, shape index: {}]
  %s17 = inlined_call_operand.vmem [shape: f32[1,32], index: 17, kind: input, shape index: {}]
  %s18 = inlined_call_operand.vmem [shape: f32[1,32], index: 18, kind: input, shape index: {}]
  %s19 = inlined_call_operand.hbm [shape: f32[2,8,32], index: 19, kind: output, shape index: {0}]
  %s20 = inlined_call_operand.hbm [shape: f32[4,2,8,8], index: 20, kind: output, shape index: {1}]
  %21 = xla_tuple %s19, %s20
  %s22 = sld [smem:[#allocation0]]
  $region137: #{tpu_custom_call.1} parent=0
    _
  %s24 = ssub.s32 1, %s22
  %s25 = scalar_select 0, %s24, %s22
  $region1: #{tpu_custom_call.1} parent=0
    #allocation2 [shape = 'u8[512]{0}', space=vmem, size = 0x400, scoped, tag = 'input window, operand 4, single buffered']
    #allocation3 [shape = 's32[2]{0}', space=sflag, size = 0x8, scoped, tag = 'scoped memory for tpu_custom_call.1']
    #allocation4 [shape = 's32[2]{0}', space=sflag, size = 0x8, scoped, tag = 'scoped memory for tpu_custom_call.1']
    #allocation5 [shape = 'u8[512]{0}', space=vmem, size = 0x400, scoped, tag = 'input window, operand 6, single buffered']
    #allocation6 [shape = 's32[1]{0}', space=sflag, size = 0x4, scoped, tag = 'scoped memory for tpu_custom_call.1']
    #allocation7 [shape = 'u8[8192]{0}', space=vmem, size = 0x2000, scoped, tag = 'input window, operand 7, single buffered']
    #allocation8 [shape = 'u8[512]{0}', space=vmem, size = 0x400, scoped, tag = 'input window, operand 8, single buffered']
    #allocation9 [shape = 's32[1]{0}', space=sflag, size = 0x4, scoped, tag = 'scoped memory for tpu_custom_call.1']
    #allocation10 [shape = 'u8[8192]{0}', space=vmem, size = 0x2000, scoped, tag = 'input window, operand 13, single buffered']
    #allocation11 [shape = 'u8[8192]{0}', space=vmem, size = 0x2000, scoped, tag = 'output window, operand 0']
    #allocation12 [shape = 'u8[32768]{0}', space=vmem, size = 0x8000, scoped, tag = 'output window, operand 1']
    #allocation13 [shape = 's32[2]{0}', space=sflag, size = 0x8, scoped, tag = 'scoped memory for tpu_custom_call.1']
    %26 = vsyncpa [#allocation3], 0
    %27 = vsyncpa [#allocation6], 0
    %28 = vsyncpa [#allocation9], 0
    %29 = vsyncpa [#allocation4], 0
    %s30 = scalar_lea.sflag [#allocation4], 1
    %31 = vsyncpa %s30, 0
    %32 = vsyncpa [#allocation13], 0
    %s33 = scalar_lea.sflag [#allocation13], 1
    %34 = vsyncpa %s33, 0
    loop: start=0, step=1, limit=4
    $region2: #{tpu_custom_call.1} parent=1 // loop_pre_header
      _
    $region3: #{tpu_custom_call.1} parent=1 // loop_header
      %s36 = sphi 0, %s40
      %p37 = scmp.ge.s32.totalorder %s36, 4
      %s46 = sphi 0, %s48
      %s49 = sphi 0, %s46
      %s50 = sphi 0, %s49
      %s66 = sphi 0, %s50
      %s72 = sphi 0, %s74
      %s75 = sphi 0, %s72
      %s76 = sphi 0, %s75
      %s92 = sphi 0, %s76
      %s98 = sphi 0, %s100
      %s101 = sphi 0, %s98
      %s102 = sphi 0, %s101
      %s118 = sphi 0, %s102
      %s122 = sphi 0, %s122
      %s124 = sphi 0, %s122
      %s125 = sphi 0, %s124
      %s139 = sphi 0, %s125
      %s143 = sphi 0, %s143
      %s145 = sphi 0, %s143
      %s146 = sphi 0, %s145
      %s160 = sphi 0, %s146
      %s164 = sphi 0, %s164
      %s166 = sphi 0, %s164
      %s167 = sphi 0, %s166
      %s181 = sphi 0, %s167
      %s185 = sphi 0, %s185
      %s187 = sphi 0, %s185
      %s188 = sphi 0, %s187
      %s202 = sphi 0, %s188
      %s206 = sphi 0, %s206
      %s208 = sphi 0, %s206
      %s209 = sphi 0, %s208
      %s223 = sphi 0, %s209
      %s227 = sphi 0, %s227
      %s229 = sphi 0, %s227
      %s230 = sphi 0, %s229
      %s244 = sphi 0, %s230
      %s248 = sphi 0, %s248
      %s250 = sphi 0, %s248
      %s251 = sphi 0, %s250
      %s265 = sphi 0, %s251
      %s269 = sphi 0, %s269
      %s271 = sphi 0, %s269
      %s272 = sphi 0, %s271
      %s286 = sphi 0, %s272
      %s290 = sphi 0, %s290
      %s292 = sphi 0, %s290
      %s293 = sphi 0, %s292
      %s307 = sphi 0, %s293
      %s311 = sphi 0, %s311
      %s313 = sphi 0, %s311
      %s314 = sphi 0, %s313
      %s328 = sphi 0, %s314
      %s332 = sphi 0, %s332
      %s334 = sphi 0, %s332
      %s335 = sphi 0, %s334
      %s349 = sphi 0, %s335
      %s353 = sphi 0, %s353
      %s355 = sphi 0, %s353
      %s356 = sphi 0, %s355
      %s370 = sphi 0, %s356
      %s374 = sphi 0, %s374
      %s376 = sphi 0, %s374
      %s377 = sphi 0, %s376
      %s391 = sphi 0, %s377
      %s395 = sphi 0, %s395
      %s397 = sphi 0, %s395
      %s398 = sphi 0, %s397
      %s412 = sphi 0, %s398
      %s416 = sphi 0, %s416
      %s418 = sphi 0, %s416
      %s419 = sphi 0, %s418
      %s433 = sphi 0, %s419
      %s437 = sphi 0, %s437
      %s439 = sphi 0, %s437
      %s440 = sphi 0, %s439
      %s454 = sphi 0, %s440
      %s460 = sphi 0, %s462
      %s463 = sphi 0, %s460
      %s464 = sphi 0, %s463
      %s480 = sphi 0, %s464
      %s486 = sphi 0, %s488
      %s489 = sphi 0, %s486
      %s490 = sphi 0, %s489
      %s506 = sphi 0, %s490
    $region4: #{tpu_custom_call.1} parent=1 // loop_header_branch
      %39 = sbr.rel (%p37) target = $region8
    $region5: #{tpu_custom_call.1} parent=1 // loop_body
      %s41 = ssub.s32 %s36, 1
      %s42 = ssub.s32 %s36, 2
      %s43 = sadd.s32 %s36, 1
      %s44 = ssub.s32 %s36, %s43
      %p45 = scmp.eq.s32.totalorder %s44, 0
      %s47 = sadd.s32 %s46, 1
      %s48 = scalar_select %p45, %s46, %s47
      %p51 = pneg %p45
      %p52 = scmp.eq.s32.totalorder %s36, 1
      %p53 = por %p51, %p52
      %p54 = scmp.ne.s32.totalorder %s46, %s49
      %p55 = scmp.eq.s32.totalorder %s36, 0
      %p56 = por %p54, %p55
      %p57 = scmp.ne.s32.totalorder %s46, %s49
      %p58 = scmp.eq.s32.totalorder %s41, 1
      %p59 = por %p57, %p58
      %p60 = scmp.ne.s32.totalorder %s49, %s50
      %p61 = scmp.eq.s32.totalorder %s41, 0
      %p62 = por %p60, %p61
      %p63 = scmp.ne.s32.totalorder %s49, %s50
      %p64 = scmp.eq.s32.totalorder %s42, 1
      %p65 = por %p63, %p64
      %p67 = scmp.ne.s32.totalorder %s50, %s66
      %p68 = scmp.eq.s32.totalorder %s42, 0
      %p69 = por %p67, %p68
      %s70 = ssub.s32 %s36, %s43
      %p71 = scmp.eq.s32.totalorder %s70, 0
      %s73 = sadd.s32 %s72, 1
      %s74 = scalar_select %p71, %s72, %s73
      %p77 = pneg %p71
      %p78 = scmp.eq.s32.totalorder %s36, 1
      %p79 = por %p77, %p78
      %p80 = scmp.ne.s32.totalorder %s72, %s75
      %p81 = scmp.eq.s32.totalorder %s36, 0
      %p82 = por %p80, %p81
      %p83 = scmp.ne.s32.totalorder %s72, %s75
      %p84 = scmp.eq.s32.totalorder %s41, 1
      %p85 = por %p83, %p84
      %p86 = scmp.ne.s32.totalorder %s75, %s76
      %p87 = scmp.eq.s32.totalorder %s41, 0
      %p88 = por %p86, %p87
      %p89 = scmp.ne.s32.totalorder %s75, %s76
      %p90 = scmp.eq.s32.totalorder %s42, 1
      %p91 = por %p89, %p90
      %p93 = scmp.ne.s32.totalorder %s76, %s92
      %p94 = scmp.eq.s32.totalorder %s42, 0
      %p95 = por %p93, %p94
      %s96 = ssub.s32 %s36, %s43
      %p97 = scmp.eq.s32.totalorder %s96, 0
      %s99 = sadd.s32 %s98, 1
      %s100 = scalar_select %p97, %s98, %s99
      %p103 = pneg %p97
      %p104 = scmp.eq.s32.totalorder %s36, 1
      %p105 = por %p103, %p104
      %p106 = scmp.ne.s32.totalorder %s98, %s101
      %p107 = scmp.eq.s32.totalorder %s36, 0
      %p108 = por %p106, %p107
      %p109 = scmp.ne.s32.totalorder %s98, %s101
      %p110 = scmp.eq.s32.totalorder %s41, 1
      %p111 = por %p109, %p110
      %p112 = scmp.ne.s32.totalorder %s101, %s102
      %p113 = scmp.eq.s32.totalorder %s41, 0
      %p114 = por %p112, %p113
      %p115 = scmp.ne.s32.totalorder %s101, %s102
      %p116 = scmp.eq.s32.totalorder %s42, 1
      %p117 = por %p115, %p116
      %p119 = scmp.ne.s32.totalorder %s102, %s118
      %p120 = scmp.eq.s32.totalorder %s42, 0
      %p121 = por %p119, %p120
      %s123 = sadd.s32 %s122, 1
      %p126 = scmp.eq.s32.totalorder %s36, 1
      %p127 = scmp.ne.s32.totalorder %s122, %s124
      %p128 = scmp.eq.s32.totalorder %s36, 0
      %p129 = por %p127, %p128
      %p130 = scmp.ne.s32.totalorder %s122, %s124
      %p131 = scmp.eq.s32.totalorder %s41, 1
      %p132 = por %p130, %p131
      %p133 = scmp.ne.s32.totalorder %s124, %s125
      %p134 = scmp.eq.s32.totalorder %s41, 0
      %p135 = por %p133, %p134
      %p136 = scmp.ne.s32.totalorder %s124, %s125
      %p137 = scmp.eq.s32.totalorder %s42, 1
      %p138 = por %p136, %p137
      %p140 = scmp.ne.s32.totalorder %s125, %s139
      %p141 = scmp.eq.s32.totalorder %s42, 0
      %p142 = por %p140, %p141
      %s144 = sadd.s32 %s143, 1
      %p147 = scmp.eq.s32.totalorder %s36, 1
      %p148 = scmp.ne.s32.totalorder %s143, %s145
      %p149 = scmp.eq.s32.totalorder %s36, 0
      %p150 = por %p148, %p149
      %p151 = scmp.ne.s32.totalorder %s143, %s145
      %p152 = scmp.eq.s32.totalorder %s41, 1
      %p153 = por %p151, %p152
      %p154 = scmp.ne.s32.totalorder %s145, %s146
      %p155 = scmp.eq.s32.totalorder %s41, 0
      %p156 = por %p154, %p155
      %p157 = scmp.ne.s32.totalorder %s145, %s146
      %p158 = scmp.eq.s32.totalorder %s42, 1
      %p159 = por %p157, %p158
      %p161 = scmp.ne.s32.totalorder %s146, %s160
      %p162 = scmp.eq.s32.totalorder %s42, 0
      %p163 = por %p161, %p162
      %s165 = sadd.s32 %s164, 1
      %p168 = scmp.eq.s32.totalorder %s36, 1
      %p169 = scmp.ne.s32.totalorder %s164, %s166
      %p170 = scmp.eq.s32.totalorder %s36, 0
      %p171 = por %p169, %p170
      %p172 = scmp.ne.s32.totalorder %s164, %s166
      %p173 = scmp.eq.s32.totalorder %s41, 1
      %p174 = por %p172, %p173
      %p175 = scmp.ne.s32.totalorder %s166, %s167
      %p176 = scmp.eq.s32.totalorder %s41, 0
      %p177 = por %p175, %p176
      %p178 = scmp.ne.s32.totalorder %s166, %s167
      %p179 = scmp.eq.s32.totalorder %s42, 1
      %p180 = por %p178, %p179
      %p182 = scmp.ne.s32.totalorder %s167, %s181
      %p183 = scmp.eq.s32.totalorder %s42, 0
      %p184 = por %p182, %p183
      %s186 = sadd.s32 %s185, 1
      %p189 = scmp.eq.s32.totalorder %s36, 1
      %p190 = scmp.ne.s32.totalorder %s185, %s187
      %p191 = scmp.eq.s32.totalorder %s36, 0
      %p192 = por %p190, %p191
      %p193 = scmp.ne.s32.totalorder %s185, %s187
      %p194 = scmp.eq.s32.totalorder %s41, 1
      %p195 = por %p193, %p194
      %p196 = scmp.ne.s32.totalorder %s187, %s188
      %p197 = scmp.eq.s32.totalorder %s41, 0
      %p198 = por %p196, %p197
      %p199 = scmp.ne.s32.totalorder %s187, %s188
      %p200 = scmp.eq.s32.totalorder %s42, 1
      %p201 = por %p199, %p200
      %p203 = scmp.ne.s32.totalorder %s188, %s202
      %p204 = scmp.eq.s32.totalorder %s42, 0
      %p205 = por %p203, %p204
      %s207 = sadd.s32 %s206, 1
      %p210 = scmp.eq.s32.totalorder %s36, 1
      %p211 = scmp.ne.s32.totalorder %s206, %s208
      %p212 = scmp.eq.s32.totalorder %s36, 0
      %p213 = por %p211, %p212
      %p214 = scmp.ne.s32.totalorder %s206, %s208
      %p215 = scmp.eq.s32.totalorder %s41, 1
      %p216 = por %p214, %p215
      %p217 = scmp.ne.s32.totalorder %s208, %s209
      %p218 = scmp.eq.s32.totalorder %s41, 0
      %p219 = por %p217, %p218
      %p220 = scmp.ne.s32.totalorder %s208, %s209
      %p221 = scmp.eq.s32.totalorder %s42, 1
      %p222 = por %p220, %p221
      %p224 = scmp.ne.s32.totalorder %s209, %s223
      %p225 = scmp.eq.s32.totalorder %s42, 0
      %p226 = por %p224, %p225
      %s228 = sadd.s32 %s227, 1
      %p231 = scmp.eq.s32.totalorder %s36, 1
      %p232 = scmp.ne.s32.totalorder %s227, %s229
      %p233 = scmp.eq.s32.totalorder %s36, 0
      %p234 = por %p232, %p233
      %p235 = scmp.ne.s32.totalorder %s227, %s229
      %p236 = scmp.eq.s32.totalorder %s41, 1
      %p237 = por %p235, %p236
      %p238 = scmp.ne.s32.totalorder %s229, %s230
      %p239 = scmp.eq.s32.totalorder %s41, 0
      %p240 = por %p238, %p239
      %p241 = scmp.ne.s32.totalorder %s229, %s230
      %p242 = scmp.eq.s32.totalorder %s42, 1
      %p243 = por %p241, %p242
      %p245 = scmp.ne.s32.totalorder %s230, %s244
      %p246 = scmp.eq.s32.totalorder %s42, 0
      %p247 = por %p245, %p246
      %s249 = sadd.s32 %s248, 1
      %p252 = scmp.eq.s32.totalorder %s36, 1
      %p253 = scmp.ne.s32.totalorder %s248, %s250
      %p254 = scmp.eq.s32.totalorder %s36, 0
      %p255 = por %p253, %p254
      %p256 = scmp.ne.s32.totalorder %s248, %s250
      %p257 = scmp.eq.s32.totalorder %s41, 1
      %p258 = por %p256, %p257
      %p259 = scmp.ne.s32.totalorder %s250, %s251
      %p260 = scmp.eq.s32.totalorder %s41, 0
      %p261 = por %p259, %p260
      %p262 = scmp.ne.s32.totalorder %s250, %s251
      %p263 = scmp.eq.s32.totalorder %s42, 1
      %p264 = por %p262, %p263
      %p266 = scmp.ne.s32.totalorder %s251, %s265
      %p267 = scmp.eq.s32.totalorder %s42, 0
      %p268 = por %p266, %p267
      %s270 = sadd.s32 %s269, 1
      %p273 = scmp.eq.s32.totalorder %s36, 1
      %p274 = scmp.ne.s32.totalorder %s269, %s271
      %p275 = scmp.eq.s32.totalorder %s36, 0
      %p276 = por %p274, %p275
      %p277 = scmp.ne.s32.totalorder %s269, %s271
      %p278 = scmp.eq.s32.totalorder %s41, 1
      %p279 = por %p277, %p278
      %p280 = scmp.ne.s32.totalorder %s271, %s272
      %p281 = scmp.eq.s32.totalorder %s41, 0
      %p282 = por %p280, %p281
      %p283 = scmp.ne.s32.totalorder %s271, %s272
      %p284 = scmp.eq.s32.totalorder %s42, 1
      %p285 = por %p283, %p284
      %p287 = scmp.ne.s32.totalorder %s272, %s286
      %p288 = scmp.eq.s32.totalorder %s42, 0
      %p289 = por %p287, %p288
      %s291 = sadd.s32 %s290, 1
      %p294 = scmp.eq.s32.totalorder %s36, 1
      %p295 = scmp.ne.s32.totalorder %s290, %s292
      %p296 = scmp.eq.s32.totalorder %s36, 0
      %p297 = por %p295, %p296
      %p298 = scmp.ne.s32.totalorder %s290, %s292
      %p299 = scmp.eq.s32.totalorder %s41, 1
      %p300 = por %p298, %p299
      %p301 = scmp.ne.s32.totalorder %s292, %s293
      %p302 = scmp.eq.s32.totalorder %s41, 0
      %p303 = por %p301, %p302
      %p304 = scmp.ne.s32.totalorder %s292, %s293
      %p305 = scmp.eq.s32.totalorder %s42, 1
      %p306 = por %p304, %p305
      %p308 = scmp.ne.s32.totalorder %s293, %s307
      %p309 = scmp.eq.s32.totalorder %s42, 0
      %p310 = por %p308, %p309
      %s312 = sadd.s32 %s311, 1
      %p315 = scmp.eq.s32.totalorder %s36, 1
      %p316 = scmp.ne.s32.totalorder %s311, %s313
      %p317 = scmp.eq.s32.totalorder %s36, 0
      %p318 = por %p316, %p317
      %p319 = scmp.ne.s32.totalorder %s311, %s313
      %p320 = scmp.eq.s32.totalorder %s41, 1
      %p321 = por %p319, %p320
      %p322 = scmp.ne.s32.totalorder %s313, %s314
      %p323 = scmp.eq.s32.totalorder %s41, 0
      %p324 = por %p322, %p323
      %p325 = scmp.ne.s32.totalorder %s313, %s314
      %p326 = scmp.eq.s32.totalorder %s42, 1
      %p327 = por %p325, %p326
      %p329 = scmp.ne.s32.totalorder %s314, %s328
      %p330 = scmp.eq.s32.totalorder %s42, 0
      %p331 = por %p329, %p330
      %s333 = sadd.s32 %s332, 1
      %p336 = scmp.eq.s32.totalorder %s36, 1
      %p337 = scmp.ne.s32.totalorder %s332, %s334
      %p338 = scmp.eq.s32.totalorder %s36, 0
      %p339 = por %p337, %p338
      %p340 = scmp.ne.s32.totalorder %s332, %s334
      %p341 = scmp.eq.s32.totalorder %s41, 1
      %p342 = por %p340, %p341
      %p343 = scmp.ne.s32.totalorder %s334, %s335
      %p344 = scmp.eq.s32.totalorder %s41, 0
      %p345 = por %p343, %p344
      %p346 = scmp.ne.s32.totalorder %s334, %s335
      %p347 = scmp.eq.s32.totalorder %s42, 1
      %p348 = por %p346, %p347
      %p350 = scmp.ne.s32.totalorder %s335, %s349
      %p351 = scmp.eq.s32.totalorder %s42, 0
      %p352 = por %p350, %p351
      %s354 = sadd.s32 %s353, 1
      %p357 = scmp.eq.s32.totalorder %s36, 1
      %p358 = scmp.ne.s32.totalorder %s353, %s355
      %p359 = scmp.eq.s32.totalorder %s36, 0
      %p360 = por %p358, %p359
      %p361 = scmp.ne.s32.totalorder %s353, %s355
      %p362 = scmp.eq.s32.totalorder %s41, 1
      %p363 = por %p361, %p362
      %p364 = scmp.ne.s32.totalorder %s355, %s356
      %p365 = scmp.eq.s32.totalorder %s41, 0
      %p366 = por %p364, %p365
      %p367 = scmp.ne.s32.totalorder %s355, %s356
      %p368 = scmp.eq.s32.totalorder %s42, 1
      %p369 = por %p367, %p368
      %p371 = scmp.ne.s32.totalorder %s356, %s370
      %p372 = scmp.eq.s32.totalorder %s42, 0
      %p373 = por %p371, %p372
      %s375 = sadd.s32 %s374, 1
      %p378 = scmp.eq.s32.totalorder %s36, 1
      %p379 = scmp.ne.s32.totalorder %s374, %s376
      %p380 = scmp.eq.s32.totalorder %s36, 0
      %p381 = por %p379, %p380
      %p382 = scmp.ne.s32.totalorder %s374, %s376
      %p383 = scmp.eq.s32.totalorder %s41, 1
      %p384 = por %p382, %p383
      %p385 = scmp.ne.s32.totalorder %s376, %s377
      %p386 = scmp.eq.s32.totalorder %s41, 0
      %p387 = por %p385, %p386
      %p388 = scmp.ne.s32.totalorder %s376, %s377
      %p389 = scmp.eq.s32.totalorder %s42, 1
      %p390 = por %p388, %p389
      %p392 = scmp.ne.s32.totalorder %s377, %s391
      %p393 = scmp.eq.s32.totalorder %s42, 0
      %p394 = por %p392, %p393
      %s396 = sadd.s32 %s395, 1
      %p399 = scmp.eq.s32.totalorder %s36, 1
      %p400 = scmp.ne.s32.totalorder %s395, %s397
      %p401 = scmp.eq.s32.totalorder %s36, 0
      %p402 = por %p400, %p401
      %p403 = scmp.ne.s32.totalorder %s395, %s397
      %p404 = scmp.eq.s32.totalorder %s41, 1
      %p405 = por %p403, %p404
      %p406 = scmp.ne.s32.totalorder %s397, %s398
      %p407 = scmp.eq.s32.totalorder %s41, 0
      %p408 = por %p406, %p407
      %p409 = scmp.ne.s32.totalorder %s397, %s398
      %p410 = scmp.eq.s32.totalorder %s42, 1
      %p411 = por %p409, %p410
      %p413 = scmp.ne.s32.totalorder %s398, %s412
      %p414 = scmp.eq.s32.totalorder %s42, 0
      %p415 = por %p413, %p414
      %s417 = sadd.s32 %s416, 1
      %p420 = scmp.eq.s32.totalorder %s36, 1
      %p421 = scmp.ne.s32.totalorder %s416, %s418
      %p422 = scmp.eq.s32.totalorder %s36, 0
      %p423 = por %p421, %p422
      %p424 = scmp.ne.s32.totalorder %s416, %s418
      %p425 = scmp.eq.s32.totalorder %s41, 1
      %p426 = por %p424, %p425
      %p427 = scmp.ne.s32.totalorder %s418, %s419
      %p428 = scmp.eq.s32.totalorder %s41, 0
      %p429 = por %p427, %p428
      %p430 = scmp.ne.s32.totalorder %s418, %s419
      %p431 = scmp.eq.s32.totalorder %s42, 1
      %p432 = por %p430, %p431
      %p434 = scmp.ne.s32.totalorder %s419, %s433
      %p435 = scmp.eq.s32.totalorder %s42, 0
      %p436 = por %p434, %p435
      %s438 = sadd.s32 %s437, 1
      %p441 = scmp.eq.s32.totalorder %s36, 1
      %p442 = scmp.ne.s32.totalorder %s437, %s439
      %p443 = scmp.eq.s32.totalorder %s36, 0
      %p444 = por %p442, %p443
      %p445 = scmp.ne.s32.totalorder %s437, %s439
      %p446 = scmp.eq.s32.totalorder %s41, 1
      %p447 = por %p445, %p446
      %p448 = scmp.ne.s32.totalorder %s439, %s440
      %p449 = scmp.eq.s32.totalorder %s41, 0
      %p450 = por %p448, %p449
      %p451 = scmp.ne.s32.totalorder %s439, %s440
      %p452 = scmp.eq.s32.totalorder %s42, 1
      %p453 = por %p451, %p452
      %p455 = scmp.ne.s32.totalorder %s440, %s454
      %p456 = scmp.eq.s32.totalorder %s42, 0
      %p457 = por %p455, %p456
      %s458 = ssub.s32 %s36, %s43
      %p459 = scmp.eq.s32.totalorder %s458, 0
      %s461 = sadd.s32 %s460, 1
      %s462 = scalar_select %p459, %s460, %s461
      %p465 = pneg %p459
      %p466 = scmp.eq.s32.totalorder %s36, 1
      %p467 = por %p465, %p466
      %p468 = scmp.ne.s32.totalorder %s460, %s463
      %p469 = scmp.eq.s32.totalorder %s36, 0
      %p470 = por %p468, %p469
      %p471 = scmp.ne.s32.totalorder %s460, %s463
      %p472 = scmp.eq.s32.totalorder %s41, 1
      %p473 = por %p471, %p472
      %p474 = scmp.ne.s32.totalorder %s463, %s464
      %p475 = scmp.eq.s32.totalorder %s41, 0
      %p476 = por %p474, %p475
      %p477 = scmp.ne.s32.totalorder %s463, %s464
      %p478 = scmp.eq.s32.totalorder %s42, 1
      %p479 = por %p477, %p478
      %p481 = scmp.ne.s32.totalorder %s464, %s480
      %p482 = scmp.eq.s32.totalorder %s42, 0
      %p483 = por %p481, %p482
      %s484 = ssub.s32 %s36, %s43
      %p485 = scmp.eq.s32.totalorder %s484, 0
      %s487 = sadd.s32 %s486, 1
      %s488 = scalar_select %p485, %s486, %s487
      %p491 = pneg %p485
      %p492 = scmp.eq.s32.totalorder %s36, 1
      %p493 = por %p491, %p492
      %p494 = scmp.ne.s32.totalorder %s486, %s489
      %p495 = scmp.eq.s32.totalorder %s36, 0
      %p496 = por %p494, %p495
      %p497 = scmp.ne.s32.totalorder %s486, %s489
      %p498 = scmp.eq.s32.totalorder %s41, 1
      %p499 = por %p497, %p498
      %p500 = scmp.ne.s32.totalorder %s489, %s490
      %p501 = scmp.eq.s32.totalorder %s41, 0
      %p502 = por %p500, %p501
      %p503 = scmp.ne.s32.totalorder %s489, %s490
      %p504 = scmp.eq.s32.totalorder %s42, 1
      %p505 = por %p503, %p504
      %p507 = scmp.ne.s32.totalorder %s490, %s506
      %p508 = scmp.eq.s32.totalorder %s42, 0
      %p509 = por %p507, %p508
      %p510 = scmp.le.s32.totalorder 1, %s36
      %p511 = scmp.lt.s32.totalorder %s36, 3
      %p512 = pnand %p510, %p511
      %p513 = pneg %p512
      // Predicated region
      $region9: #{tpu_custom_call.1} parent=5 // pred_check
        _
      $region10: #{tpu_custom_call.1} parent=5 // pred_check_branch
        %515 = sbr.rel (%p512) target = $region12
      $region11: #{tpu_custom_call.1} parent=5 // pred_region
        %s516 = ssub.s32 %s36, 1
        // Predicated region
        $region13: #{tpu_custom_call.1} parent=11 // pred_check
          %p517 = pneg %p135
        $region14: #{tpu_custom_call.1} parent=11 // pred_check_branch
          %519 = sbr.rel (%p517) target = $region16
        $region15: #{tpu_custom_call.1} parent=11 // pred_region
          _
        $region16: #{tpu_custom_call.1} parent=11 // pred_fallthru
          _
        // Predicated region
        $region17: #{tpu_custom_call.1} parent=11 // pred_check
          %p520 = pneg %p156
        $region18: #{tpu_custom_call.1} parent=11 // pred_check_branch
          %522 = sbr.rel (%p520) target = $region20
        $region19: #{tpu_custom_call.1} parent=11 // pred_region
          %s524 = ssub.s32 16, 16
          %525 = vsyncadd [#allocation3], %s524
          %s527 = sshll.u32 [#allocation2], 4
          %s528 = int_to_ptr.vmem [resolvable:$true] %s527
          %530 = dma.hbm_to_vmem [thread:$0]  %s4, 16, %s528, [#allocation3]
        $region20: #{tpu_custom_call.1} parent=11 // pred_fallthru
          _
        // Predicated region
        $region21: #{tpu_custom_call.1} parent=11 // pred_check
          %p531 = pneg %p177
        $region22: #{tpu_custom_call.1} parent=11 // pred_check_branch
          %533 = sbr.rel (%p531) target = $region24
        $region23: #{tpu_custom_call.1} parent=11 // pred_region
          _
        $region24: #{tpu_custom_call.1} parent=11 // pred_fallthru
          _
        // Predicated region
        $region25: #{tpu_custom_call.1} parent=11 // pred_check
          %p534 = pneg %p198
        $region26: #{tpu_custom_call.1} parent=11 // pred_check_branch
          %536 = sbr.rel (%p534) target = $region28
        $region27: #{tpu_custom_call.1} parent=11 // pred_region
          %s538 = ssub.s32 16, 16
          %539 = vsyncadd [#allocation6], %s538
          %s541 = sshll.u32 [#allocation5], 4
          %s542 = int_to_ptr.vmem [resolvable:$true] %s541
          %544 = dma.hbm_to_vmem [thread:$0]  %s6, 16, %s542, [#allocation6]
        $region28: #{tpu_custom_call.1} parent=11 // pred_fallthru
          _
        // Predicated region
        $region29: #{tpu_custom_call.1} parent=11 // pred_check
          %p545 = pneg %p219
        $region30: #{tpu_custom_call.1} parent=11 // pred_check_branch
          %547 = sbr.rel (%p545) target = $region32
        $region31: #{tpu_custom_call.1} parent=11 // pred_region
          %s549 = ssub.s32 256, 256
          %550 = vsyncadd [#allocation6], %s549
          %s551 = sshll.u32 [#allocation7], 4
          %s552 = int_to_ptr.vmem [resolvable:$true] %s551
          %557 = dma.hbm_to_vmem [thread:$0]  %s7, 256, %s552, [#allocation6], 64, 64, 4
        $region32: #{tpu_custom_call.1} parent=11 // pred_fallthru
          _
        // Predicated region
        $region33: #{tpu_custom_call.1} parent=11 // pred_check
          %p558 = pneg %p240
        $region34: #{tpu_custom_call.1} parent=11 // pred_check_branch
          %560 = sbr.rel (%p558) target = $region36
        $region35: #{tpu_custom_call.1} parent=11 // pred_region
          %s562 = ssub.s32 16, 16
          %563 = vsyncadd [#allocation9], %s562
          %s565 = sshll.u32 [#allocation8], 4
          %s566 = int_to_ptr.vmem [resolvable:$true] %s565
          %568 = dma.hbm_to_vmem [thread:$0]  %s8, 16, %s566, [#allocation9]
        $region36: #{tpu_custom_call.1} parent=11 // pred_fallthru
          _
        // Predicated region
        $region37: #{tpu_custom_call.1} parent=11 // pred_check
          %p569 = pneg %p261
        $region38: #{tpu_custom_call.1} parent=11 // pred_check_branch
          %571 = sbr.rel (%p569) target = $region40
        $region39: #{tpu_custom_call.1} parent=11 // pred_region
          _
        $region40: #{tpu_custom_call.1} parent=11 // pred_fallthru
          _
        // Predicated region
        $region41: #{tpu_custom_call.1} parent=11 // pred_check
          %p572 = pneg %p282
        $region42: #{tpu_custom_call.1} parent=11 // pred_check_branch
          %574 = sbr.rel (%p572) target = $region44
        $region43: #{tpu_custom_call.1} parent=11 // pred_region
          _
        $region44: #{tpu_custom_call.1} parent=11 // pred_fallthru
          _
        // Predicated region
        $region45: #{tpu_custom_call.1} parent=11 // pred_check
          %p575 = pneg %p303
        $region46: #{tpu_custom_call.1} parent=11 // pred_check_branch
          %577 = sbr.rel (%p575) target = $region48
        $region47: #{tpu_custom_call.1} parent=11 // pred_region
          _
        $region48: #{tpu_custom_call.1} parent=11 // pred_fallthru
          _
        // Predicated region
        $region49: #{tpu_custom_call.1} parent=11 // pred_check
          %p578 = pneg %p324
        $region50: #{tpu_custom_call.1} parent=11 // pred_check_branch
          %580 = sbr.rel (%p578) target = $region52
        $region51: #{tpu_custom_call.1} parent=11 // pred_region
          _
        $region52: #{tpu_custom_call.1} parent=11 // pred_fallthru
          _
        // Predicated region
        $region53: #{tpu_custom_call.1} parent=11 // pred_check
          %p581 = pneg %p345
        $region54: #{tpu_custom_call.1} parent=11 // pred_check_branch
          %583 = sbr.rel (%p581) target = $region56
        $region55: #{tpu_custom_call.1} parent=11 // pred_region
          %s585 = ssub.s32 256, 256
          %586 = vsyncadd [#allocation9], %s585
          %s587 = sshll.u32 [#allocation10], 4
          %s588 = int_to_ptr.vmem [resolvable:$true] %s587
          %593 = dma.hbm_to_vmem [thread:$0]  %s13, 256, %s588, [#allocation9], 64, 64, 4
        $region56: #{tpu_custom_call.1} parent=11 // pred_fallthru
          _
        // Predicated region
        $region57: #{tpu_custom_call.1} parent=11 // pred_check
          %p594 = pneg %p366
        $region58: #{tpu_custom_call.1} parent=11 // pred_check_branch
          %596 = sbr.rel (%p594) target = $region60
        $region59: #{tpu_custom_call.1} parent=11 // pred_region
          _
        $region60: #{tpu_custom_call.1} parent=11 // pred_fallthru
          _
        // Predicated region
        $region61: #{tpu_custom_call.1} parent=11 // pred_check
          %p597 = pneg %p387
        $region62: #{tpu_custom_call.1} parent=11 // pred_check_branch
          %599 = sbr.rel (%p597) target = $region64
        $region63: #{tpu_custom_call.1} parent=11 // pred_region
          _
        $region64: #{tpu_custom_call.1} parent=11 // pred_fallthru
          _
        // Predicated region
        $region65: #{tpu_custom_call.1} parent=11 // pred_check
          %p600 = pneg %p408
        $region66: #{tpu_custom_call.1} parent=11 // pred_check_branch
          %602 = sbr.rel (%p600) target = $region68
        $region67: #{tpu_custom_call.1} parent=11 // pred_region
          _
        $region68: #{tpu_custom_call.1} parent=11 // pred_fallthru
          _
        // Predicated region
        $region69: #{tpu_custom_call.1} parent=11 // pred_check
          %p603 = pneg %p429
        $region70: #{tpu_custom_call.1} parent=11 // pred_check_branch
          %605 = sbr.rel (%p603) target = $region72
        $region71: #{tpu_custom_call.1} parent=11 // pred_region
          _
        $region72: #{tpu_custom_call.1} parent=11 // pred_fallthru
          _
        // Predicated region
        $region73: #{tpu_custom_call.1} parent=11 // pred_check
          %p606 = pneg %p450
        $region74: #{tpu_custom_call.1} parent=11 // pred_check_branch
          %608 = sbr.rel (%p606) target = $region76
        $region75: #{tpu_custom_call.1} parent=11 // pred_region
          _
        $region76: #{tpu_custom_call.1} parent=11 // pred_fallthru
          _
      $region12: #{tpu_custom_call.1} parent=5 // pred_fallthru
        _
      %p609 = scmp.lt.s32.totalorder %s36, 2
      // Predicated region
      $region77: #{tpu_custom_call.1} parent=5 // pred_check
        %p610 = pneg %p609
      $region78: #{tpu_custom_call.1} parent=5 // pred_check_branch
        %612 = sbr.rel (%p610) target = $region80
      $region79: #{tpu_custom_call.1} parent=5 // pred_region
        // Predicated region
        $region81: #{tpu_custom_call.1} parent=79 // pred_check
          %p613 = pneg %p56
        $region82: #{tpu_custom_call.1} parent=79 // pred_check_branch
          %615 = sbr.rel (%p613) target = $region84
        $region83: #{tpu_custom_call.1} parent=79 // pred_region
          %p616 = scmp.lt.s32.totalorder %s36, 1
          %s617 = scalar_select %p616, %s36, 1
          %s618 = smul.addr %s617, 8
          %s619 = scalar_lea.vmem %s0, %s618
        $region84: #{tpu_custom_call.1} parent=79 // pred_fallthru
          _
        // Predicated region
        $region85: #{tpu_custom_call.1} parent=79 // pred_check
          %p620 = pneg %p82
        $region86: #{tpu_custom_call.1} parent=79 // pred_check_branch
          %622 = sbr.rel (%p620) target = $region88
        $region87: #{tpu_custom_call.1} parent=79 // pred_region
          %p623 = scmp.lt.s32.totalorder %s36, 1
          %s624 = scalar_select %p623, %s36, 1
          %s625 = smul.addr %s624, 8
          %s626 = scalar_lea.vmem %s1, %s625
        $region88: #{tpu_custom_call.1} parent=79 // pred_fallthru
          _
        // Predicated region
        $region89: #{tpu_custom_call.1} parent=79 // pred_check
          %p627 = pneg %p108
        $region90: #{tpu_custom_call.1} parent=79 // pred_check_branch
          %629 = sbr.rel (%p627) target = $region92
        $region91: #{tpu_custom_call.1} parent=79 // pred_region
          %p630 = scmp.lt.s32.totalorder %s36, 1
          %s631 = scalar_select %p630, %s36, 1
          %s632 = smul.addr %s631, 8
          %s633 = scalar_lea.vmem %s2, %s632
        $region92: #{tpu_custom_call.1} parent=79 // pred_fallthru
          _
      $region80: #{tpu_custom_call.1} parent=5 // pred_fallthru
        _
      %p634 = scmp.le.s32.totalorder 1, %s36
      %p635 = scmp.lt.s32.totalorder %s36, 3
      %p636 = pnand %p634, %p635
      %p637 = pneg %p636
      // Predicated region
      $region93: #{tpu_custom_call.1} parent=5 // pred_check
        _
      $region94: #{tpu_custom_call.1} parent=5 // pred_check_branch
        %639 = sbr.rel (%p636) target = $region96
      $region95: #{tpu_custom_call.1} parent=5 // pred_region
        %s640 = ssub.s32 %s36, 1
        // Predicated region
        $region97: #{tpu_custom_call.1} parent=95 // pred_check
          %p641 = pneg %p156
        $region98: #{tpu_custom_call.1} parent=95 // pred_check_branch
          %643 = sbr.rel (%p641) target = $region100
        $region99: #{tpu_custom_call.1} parent=95 // pred_region
          %644 = dma.done [#allocation3], 16
        $region100: #{tpu_custom_call.1} parent=95 // pred_fallthru
          _
        // Predicated region
        $region101: #{tpu_custom_call.1} parent=95 // pred_check
          %p645 = pneg %p198
        $region102: #{tpu_custom_call.1} parent=95 // pred_check_branch
          %647 = sbr.rel (%p645) target = $region104
        $region103: #{tpu_custom_call.1} parent=95 // pred_region
          %648 = dma.done [#allocation6], 16
        $region104: #{tpu_custom_call.1} parent=95 // pred_fallthru
          _
        // Predicated region
        $region105: #{tpu_custom_call.1} parent=95 // pred_check
          %p649 = pneg %p219
        $region106: #{tpu_custom_call.1} parent=95 // pred_check_branch
          %651 = sbr.rel (%p649) target = $region108
        $region107: #{tpu_custom_call.1} parent=95 // pred_region
          %652 = dma.done [#allocation6], 256
        $region108: #{tpu_custom_call.1} parent=95 // pred_fallthru
          _
        // Predicated region
        $region109: #{tpu_custom_call.1} parent=95 // pred_check
          %p653 = pneg %p240
        $region110: #{tpu_custom_call.1} parent=95 // pred_check_branch
          %655 = sbr.rel (%p653) target = $region112
        $region111: #{tpu_custom_call.1} parent=95 // pred_region
          %656 = dma.done [#allocation9], 16
        $region112: #{tpu_custom_call.1} parent=95 // pred_fallthru
          _
        // Predicated region
        $region113: #{tpu_custom_call.1} parent=95 // pred_check
          %p657 = pneg %p345
        $region114: #{tpu_custom_call.1} parent=95 // pred_check_branch
          %659 = sbr.rel (%p657) target = $region116
        $region115: #{tpu_custom_call.1} parent=95 // pred_region
          %660 = dma.done [#allocation9], 256
        $region116: #{tpu_custom_call.1} parent=95 // pred_fallthru
          _
        %p661 = scmp.lt.s32.totalorder %s41, 1
        %s662 = scalar_select %p661, %s41, 1
        %s663 = smul.addr %s662, 8
        %s664 = scalar_lea.vmem %s0, %s663
        %p665 = pneg %p62
        %p666 = pneg %p59
        %p667 = scmp.lt.s32.totalorder %s41, 1
        %s668 = scalar_select %p667, %s41, 1
        %s669 = smul.addr %s668, 8
        %s670 = scalar_lea.vmem %s1, %s669
        %p671 = pneg %p88
        %p672 = pneg %p85
        %p673 = scmp.lt.s32.totalorder %s41, 1
        %s674 = scalar_select %p673, %s41, 1
        %s675 = smul.addr %s674, 8
        %s676 = scalar_lea.vmem %s2, %s675
        %p677 = pneg %p114
        %p678 = pneg %p111
        %p679 = pneg %p135
        %p680 = pneg %p132
        %p681 = pneg %p156
        %p682 = pneg %p153
        %p683 = pneg %p177
        %p684 = pneg %p174
        %p685 = pneg %p198
        %p686 = pneg %p195
        %p687 = pneg %p219
        %p688 = pneg %p216
        %p689 = pneg %p240
        %p690 = pneg %p237
        %p691 = pneg %p261
        %p692 = pneg %p258
        %p693 = pneg %p282
        %p694 = pneg %p279
        %p695 = pneg %p303
        %p696 = pneg %p300
        %p697 = pneg %p324
        %p698 = pneg %p321
        %p699 = pneg %p345
        %p700 = pneg %p342
        %p701 = pneg %p366
        %p702 = pneg %p363
        %p703 = pneg %p387
        %p704 = pneg %p384
        %p705 = pneg %p408
        %p706 = pneg %p405
        %p707 = pneg %p429
        %p708 = pneg %p426
        %p709 = pneg %p450
        %p710 = pneg %p447
        %p711 = pneg %p476
        %p712 = pneg %p473
        %s713 = sand.u32 %s463, 1
        %s714 = scalar_lea.sflag [#allocation4], %s713
        %s715 = sand.u32 %s463, 1
        %s716 = smul.addr %s715, 8
        %s717 = scalar_lea.vmem [#allocation11], %s716
        %p718 = pneg %p502
        %p719 = pneg %p499
        %s720 = sand.u32 %s489, 1
        %s721 = scalar_lea.sflag [#allocation13], %s720
        %s722 = sand.u32 %s489, 1
        %s723 = smul.addr %s722, 32
        %s724 = scalar_lea.vmem [#allocation12], %s723
        %p725 = scmp.lt.s32.totalorder %s41, 1
        %s726 = scalar_select %p725, %s41, 1
        %s727 = smul.addr %s726, 8
        %s728 = scalar_lea.vmem %s0, %s727
        %p729 = scmp.lt.s32.totalorder %s41, 1
        %s730 = scalar_select %p729, %s41, 1
        %s731 = smul.addr %s730, 8
        %s732 = scalar_lea.vmem %s1, %s731
        %p733 = scmp.lt.s32.totalorder %s41, 1
        %s734 = scalar_select %p733, %s41, 1
        %s735 = smul.addr %s734, 8
        %s736 = scalar_lea.vmem %s2, %s735
        %v738 = vld [vmem:[%s728] sm:$0xff]
        %v739 = vld [vmem:[%s732] sm:$0xff]
        %v740 = vld [vmem:[%s736] sm:$0xff]
        %v741 = vpack.c.bf16 %v738, %v738
        %v742 = vld [vmem:[%s3] sm:$0xf]
        %v743 = vld [vmem:[%s3 + $0x4] sm:$0xf]
        %v744 = vld [vmem:[%s3 + $0x8] sm:$0xf]
        %v745 = vld [vmem:[%s3 + $0xc] sm:$0xf]
        %v746 = vld [vmem:[#allocation2] sm:$0x1]
        %v748 = vlaneseq
        %v749 = vshrl.u32 %v748, 7
        %v750 = vsub.s32 0, %v749
        %v751 = vrot.slane %v746, %v750
        %v757 = vunpack.c.l.b16 %v742
        %v758 = vunpack.c.l.b16 %v743
        %v759 = vunpack.c.l.b16 %v744
        %v760 = vunpack.c.l.b16 %v745
        %v761 = vpack.c.b16 %v758, %v757
        %v762 = vpack.c.b16 %v760, %v759
        %vm765 = vcmask 261120
        %v767 = vsel %vm765, %v741, 0
        %769 = vmatprep.subr.bf16.mxu0 0
        %770 = vmatpush1.bf16.msra.mxu0 0
        %771 = vmatprep.subr.bf16.mxu0 0
        %772 = vmatpush1.bf16.msra.mxu0 0
        %773 = vmatprep.subr.bf16.mxu0 0
        %774 = vmatpush1.bf16.msra.mxu0 0
        %775 = vmatprep.subr.bf16.mxu0 0
        %776 = vmatpush1.bf16.msra.mxu0 0
        %777 = vmatprep.subr.bf16.mxu0 0
        %778 = vmatpush1.bf16.msra.mxu0 0
        %779 = vmatprep.subr.bf16.mxu0 0
        %780 = vmatpush1.bf16.msra.mxu0 0
        %781 = vmatprep.subr.bf16.mxu0 0
        %782 = vmatpush1.bf16.msra.mxu0 %v762
        %783 = vmatprep.subr.bf16.mxu0 0
        %784 = vmatpush1.bf16.msra.mxu0 %v761
        %785 = vmatprep.subr.bf16.mxu0 0
        %786 = vmatpush2.bf16.msra.mxu0 0
        %787 = vmatprep.subr.bf16.mxu0 0
        %788 = vmatpush2.bf16.msra.mxu0 0
        %789 = vmatprep.subr.bf16.mxu0 0
        %790 = vmatpush2.bf16.msra.mxu0 0
        %791 = vmatprep.subr.bf16.mxu0 0
        %792 = vmatpush2.bf16.msra.mxu0 0
        %793 = vmatprep.subr.bf16.mxu0 0
        %794 = vmatpush2.bf16.msra.mxu0 0
        %795 = vmatprep.subr.bf16.mxu0 0
        %796 = vmatpush2.bf16.msra.mxu0 0
        %797 = vmatprep.subr.bf16.mxu0 0
        %798 = vmatpush2.bf16.msra.mxu0 0
        %799 = vmatprep.subr.bf16.mxu0 0
        %800 = vmatpush2.bf16.msra.mxu0 0
        %801 = vmatprep.mubr.bf16.mxu0 0
        %802 = vmatmul.mubr.bf16.gmra.mxu0 %v767
        %v803 = vpop.f32.mrf.mxu0
        %v804 = vadd.f32 %v751, %v803
        %v805 = vpop.f32.mrf.mxu0
        %v806 = vpop.f32.mrf.mxu0
        %v807 = vpop.f32.mrf.mxu0
        %808 = vdwg.mxu0
        %v809 = vld [vmem:[%s5] sm:$0xf]
        %v810 = vld [vmem:[%s5 + $0x4] sm:$0xf]
        %v811 = vld [vmem:[%s5 + $0x8] sm:$0xf]
        %v812 = vld [vmem:[%s5 + $0xc] sm:$0xf]
        %v813 = vld [vmem:[#allocation5] sm:$0x1]
        %v815 = vlaneseq
        %v816 = vshrl.u32 %v815, 7
        %v817 = vsub.s32 0, %v816
        %v818 = vrot.slane %v813, %v817
        %v824 = vunpack.c.l.b16 %v809
        %v825 = vunpack.c.l.b16 %v810
        %v826 = vunpack.c.l.b16 %v811
        %v827 = vunpack.c.l.b16 %v812
        %v828 = vpack.c.b16 %v825, %v824
        %v829 = vpack.c.b16 %v827, %v826
        %832 = vmatprep.subr.bf16.mxu0 0
        %833 = vmatpush1.bf16.msra.mxu0 0
        %834 = vmatprep.subr.bf16.mxu0 0
        %835 = vmatpush1.bf16.msra.mxu0 0
        %836 = vmatprep.subr.bf16.mxu0 0
        %837 = vmatpush1.bf16.msra.mxu0 0
        %838 = vmatprep.subr.bf16.mxu0 0
        %839 = vmatpush1.bf16.msra.mxu0 0
        %840 = vmatprep.subr.bf16.mxu0 0
        %841 = vmatpush1.bf16.msra.mxu0 0
        %842 = vmatprep.subr.bf16.mxu0 0
        %843 = vmatpush1.bf16.msra.mxu0 0
        %844 = vmatprep.subr.bf16.mxu0 0
        %845 = vmatpush1.bf16.msra.mxu0 %v829
        %846 = vmatprep.subr.bf16.mxu0 0
        %847 = vmatpush1.bf16.msra.mxu0 %v828
        %848 = vmatprep.subr.bf16.mxu0 0
        %849 = vmatpush2.bf16.msra.mxu0 0
        %850 = vmatprep.subr.bf16.mxu0 0
        %851 = vmatpush2.bf16.msra.mxu0 0
        %852 = vmatprep.subr.bf16.mxu0 0
        %853 = vmatpush2.bf16.msra.mxu0 0
        %854 = vmatprep.subr.bf16.mxu0 0
        %855 = vmatpush2.bf16.msra.mxu0 0
        %856 = vmatprep.subr.bf16.mxu0 0
        %857 = vmatpush2.bf16.msra.mxu0 0
        %858 = vmatprep.subr.bf16.mxu0 0
        %859 = vmatpush2.bf16.msra.mxu0 0
        %860 = vmatprep.subr.bf16.mxu0 0
        %861 = vmatpush2.bf16.msra.mxu0 0
        %862 = vmatprep.subr.bf16.mxu0 0
        %863 = vmatpush2.bf16.msra.mxu0 0
        %864 = vmatprep.mubr.bf16.mxu0 0
        %865 = vmatmul.mubr.bf16.gmra.mxu0 %v767
        %v866 = vpop.f32.mrf.mxu0
        %v867 = vadd.f32 %v818, %v866
        %v868 = vpop.f32.mrf.mxu0
        %v869 = vpop.f32.mrf.mxu0
        %v870 = vpop.f32.mrf.mxu0
        %871 = vdwg.mxu0
        %v872 = vld [vmem:[#allocation7] sm:$0xf]
        %v873 = vld [vmem:[#allocation7 + $0x4] sm:$0xf]
        %v874 = vld [vmem:[#allocation7 + $0x8] sm:$0xf]
        %v875 = vld [vmem:[#allocation7 + $0xc] sm:$0xf]
        %v876 = vld [vmem:[#allocation8] sm:$0x1]
        %v878 = vlaneseq
        %v879 = vshrl.u32 %v878, 7
        %v880 = vsub.s32 0, %v879
        %v881 = vrot.slane %v876, %v880
        %v887 = vunpack.c.l.b16 %v872
        %v888 = vunpack.c.l.b16 %v873
        %v889 = vunpack.c.l.b16 %v874
        %v890 = vunpack.c.l.b16 %v875
        %v891 = vpack.c.b16 %v888, %v887
        %v892 = vpack.c.b16 %v890, %v889
        %895 = vmatprep.subr.bf16.mxu0 0
        %896 = vmatpush1.bf16.msra.mxu0 0
        %897 = vmatprep.subr.bf16.mxu0 0
        %898 = vmatpush1.bf16.msra.mxu0 0
        %899 = vmatprep.subr.bf16.mxu0 0
        %900 = vmatpush1.bf16.msra.mxu0 0
        %901 = vmatprep.subr.bf16.mxu0 0
        %902 = vmatpush1.bf16.msra.mxu0 0
        %903 = vmatprep.subr.bf16.mxu0 0
        %904 = vmatpush1.bf16.msra.mxu0 0
        %905 = vmatprep.subr.bf16.mxu0 0
        %906 = vmatpush1.bf16.msra.mxu0 0
        %907 = vmatprep.subr.bf16.mxu0 0
        %908 = vmatpush1.bf16.msra.mxu0 %v892
        %909 = vmatprep.subr.bf16.mxu0 0
        %910 = vmatpush1.bf16.msra.mxu0 %v891
        %911 = vmatprep.subr.bf16.mxu0 0
        %912 = vmatpush2.bf16.msra.mxu0 0
        %913 = vmatprep.subr.bf16.mxu0 0
        %914 = vmatpush2.bf16.msra.mxu0 0
        %915 = vmatprep.subr.bf16.mxu0 0
        %916 = vmatpush2.bf16.msra.mxu0 0
        %917 = vmatprep.subr.bf16.mxu0 0
        %918 = vmatpush2.bf16.msra.mxu0 0
        %919 = vmatprep.subr.bf16.mxu0 0
        %920 = vmatpush2.bf16.msra.mxu0 0
        %921 = vmatprep.subr.bf16.mxu0 0
        %922 = vmatpush2.bf16.msra.mxu0 0
        %923 = vmatprep.subr.bf16.mxu0 0
        %924 = vmatpush2.bf16.msra.mxu0 0
        %925 = vmatprep.subr.bf16.mxu0 0
        %926 = vmatpush2.bf16.msra.mxu0 0
        %927 = vmatprep.mubr.bf16.mxu0 0
        %928 = vmatmul.mubr.bf16.gmra.mxu0 %v767
        %v929 = vpop.f32.mrf.mxu0
        %v930 = vadd.f32 %v881, %v929
        %v931 = vpop.f32.mrf.mxu0
        %v932 = vpop.f32.mrf.mxu0
        %v933 = vpop.f32.mrf.mxu0
        %934 = vdwg.mxu0
        %v935 = vmul.f32 %v804, 0.35355338
        %937 = vrot.lane.b32.xlu0 %v935, 120
        %v938 = vpop.permute.xlu0 %937
        %940 = vrot.lane.b32.xlu0 %v935, 112
        %v941 = vpop.permute.xlu0 %940
        %943 = vrot.lane.b32.xlu0 %v935, 104
        %v944 = vpop.permute.xlu0 %943
        %947 = vrot.lane.b32.xlu0 %v867, 120
        %v948 = vpop.permute.xlu0 %947
        %950 = vrot.lane.b32.xlu0 %v867, 112
        %v951 = vpop.permute.xlu0 %950
        %953 = vrot.lane.b32.xlu0 %v867, 104
        %v954 = vpop.permute.xlu0 %953
        %957 = vrot.lane.b32.xlu0 %v930, 120
        %v958 = vpop.permute.xlu0 %957
        %960 = vrot.lane.b32.xlu0 %v930, 112
        %v961 = vpop.permute.xlu0 %960
        %963 = vrot.lane.b32.xlu0 %v930, 104
        %v964 = vpop.permute.xlu0 %963
        %v966 = vpack.c.bf16 %v935, %v935
        %v967 = vpack.c.bf16 %v938, %v938
        %v968 = vpack.c.bf16 %v941, %v941
        %v969 = vpack.c.bf16 %v944, %v944
        %v970 = vpack.c.bf16 %v867, %v867
        %v971 = vpack.c.bf16 %v948, %v948
        %v972 = vpack.c.bf16 %v951, %v951
        %v973 = vpack.c.bf16 %v954, %v954
        %v974 = vpack.c.bf16 %v930, %v930
        %v975 = vpack.c.bf16 %v958, %v958
        %v976 = vpack.c.bf16 %v961, %v961
        %v977 = vpack.c.bf16 %v964, %v964
        %vm978 = vcmask 64512
        %v980 = vsel %vm978, %v966, 0
        %v983 = vsel %vm978, %v970, 0
        %985 = vmatprep.subr.bf16.mxu0 0
        %986 = vmatpush1.bf16.xpose.msra.mxu0 0
        %987 = vmatprep.subr.bf16.mxu0 0
        %988 = vmatpush1.bf16.xpose.msra.mxu0 0
        %989 = vmatprep.subr.bf16.mxu0 0
        %990 = vmatpush1.bf16.xpose.msra.mxu0 0
        %991 = vmatprep.subr.bf16.mxu0 0
        %992 = vmatpush1.bf16.xpose.msra.mxu0 0
        %993 = vmatprep.subr.bf16.mxu0 0
        %994 = vmatpush1.bf16.xpose.msra.mxu0 0
        %995 = vmatprep.subr.bf16.mxu0 0
        %996 = vmatpush1.bf16.xpose.msra.mxu0 0
        %997 = vmatprep.subr.bf16.mxu0 0
        %998 = vmatpush1.bf16.xpose.msra.mxu0 0
        %999 = vmatprep.subr.bf16.mxu0 0
        %1000 = vmatpush1.bf16.xpose.msra.mxu0 %v983
        %1001 = vmatprep.subr.bf16.mxu0 0
        %1002 = vmatpush2.bf16.xpose.msra.mxu0 0
        %1003 = vmatprep.subr.bf16.mxu0 0
        %1004 = vmatpush2.bf16.xpose.msra.mxu0 0
        %1005 = vmatprep.subr.bf16.mxu0 0
        %1006 = vmatpush2.bf16.xpose.msra.mxu0 0
        %1007 = vmatprep.subr.bf16.mxu0 0
        %1008 = vmatpush2.bf16.xpose.msra.mxu0 0
        %1009 = vmatprep.subr.bf16.mxu0 0
        %1010 = vmatpush2.bf16.xpose.msra.mxu0 0
        %1011 = vmatprep.subr.bf16.mxu0 0
        %1012 = vmatpush2.bf16.xpose.msra.mxu0 0
        %1013 = vmatprep.subr.bf16.mxu0 0
        %1014 = vmatpush2.bf16.xpose.msra.mxu0 0
        %1015 = vmatprep.subr.bf16.mxu0 0
        %1016 = vmatpush2.bf16.xpose.msra.mxu0 0
        %1017 = vmatprep.mubr.bf16.mxu0 0
        %1018 = vmatmul.mubr.bf16.gmra.mxu0 %v980
        %v1019 = vpop.f32.mrf.mxu0
        %v1020 = vadd.f32 0.0, %v1019
        %v1021 = vpop.f32.mrf.mxu0
        %v1022 = vpop.f32.mrf.mxu0
        %v1023 = vpop.f32.mrf.mxu0
        %1024 = vdwg.mxu0
        %v1026 = vsel %vm978, %v967, 0
        %v1029 = vsel %vm978, %v971, 0
        %1031 = vmatprep.subr.bf16.mxu0 0
        %1032 = vmatpush1.bf16.xpose.msra.mxu0 0
        %1033 = vmatprep.subr.bf16.mxu0 0
        %1034 = vmatpush1.bf16.xpose.msra.mxu0 0
        %1035 = vmatprep.subr.bf16.mxu0 0
        %1036 = vmatpush1.bf16.xpose.msra.mxu0 0
        %1037 = vmatprep.subr.bf16.mxu0 0
        %1038 = vmatpush1.bf16.xpose.msra.mxu0 0
        %1039 = vmatprep.subr.bf16.mxu0 0
        %1040 = vmatpush1.bf16.xpose.msra.mxu0 0
        %1041 = vmatprep.subr.bf16.mxu0 0
        %1042 = vmatpush1.bf16.xpose.msra.mxu0 0
        %1043 = vmatprep.subr.bf16.mxu0 0
        %1044 = vmatpush1.bf16.xpose.msra.mxu0 0
        %1045 = vmatprep.subr.bf16.mxu0 0
        %1046 = vmatpush1.bf16.xpose.msra.mxu0 %v1029
        %1047 = vmatprep.subr.bf16.mxu0 0
        %1048 = vmatpush2.bf16.xpose.msra.mxu0 0
        %1049 = vmatprep.subr.bf16.mxu0 0
        %1050 = vmatpush2.bf16.xpose.msra.mxu0 0
        %1051 = vmatprep.subr.bf16.mxu0 0
        %1052 = vmatpush2.bf16.xpose.msra.mxu0 0
        %1053 = vmatprep.subr.bf16.mxu0 0
        %1054 = vmatpush2.bf16.xpose.msra.mxu0 0
        %1055 = vmatprep.subr.bf16.mxu0 0
        %1056 = vmatpush2.bf16.xpose.msra.mxu0 0
        %1057 = vmatprep.subr.bf16.mxu0 0
        %1058 = vmatpush2.bf16.xpose.msra.mxu0 0
        %1059 = vmatprep.subr.bf16.mxu0 0
        %1060 = vmatpush2.bf16.xpose.msra.mxu0 0
        %1061 = vmatprep.subr.bf16.mxu0 0
        %1062 = vmatpush2.bf16.xpose.msra.mxu0 0
        %1063 = vmatprep.mubr.bf16.mxu0 0
        %1064 = vmatmul.mubr.bf16.gmra.mxu0 %v1026
        %v1065 = vpop.f32.mrf.mxu0
        %v1066 = vadd.f32 0.0, %v1065
        %v1067 = vpop.f32.mrf.mxu0
        %v1068 = vpop.f32.mrf.mxu0
        %v1069 = vpop.f32.mrf.mxu0
        %1070 = vdwg.mxu0
        %v1072 = vsel %vm978, %v968, 0
        %v1075 = vsel %vm978, %v972, 0
        %1077 = vmatprep.subr.bf16.mxu0 0
        %1078 = vmatpush1.bf16.xpose.msra.mxu0 0
        %1079 = vmatprep.subr.bf16.mxu0 0
        %1080 = vmatpush1.bf16.xpose.msra.mxu0 0
        %1081 = vmatprep.subr.bf16.mxu0 0
        %1082 = vmatpush1.bf16.xpose.msra.mxu0 0
        %1083 = vmatprep.subr.bf16.mxu0 0
        %1084 = vmatpush1.bf16.xpose.msra.mxu0 0
        %1085 = vmatprep.subr.bf16.mxu0 0
        %1086 = vmatpush1.bf16.xpose.msra.mxu0 0
        %1087 = vmatprep.subr.bf16.mxu0 0
        %1088 = vmatpush1.bf16.xpose.msra.mxu0 0
        %1089 = vmatprep.subr.bf16.mxu0 0
        %1090 = vmatpush1.bf16.xpose.msra.mxu0 0
        %1091 = vmatprep.subr.bf16.mxu0 0
        %1092 = vmatpush1.bf16.xpose.msra.mxu0 %v1075
        %1093 = vmatprep.subr.bf16.mxu0 0
        %1094 = vmatpush2.bf16.xpose.msra.mxu0 0
        %1095 = vmatprep.subr.bf16.mxu0 0
        %1096 = vmatpush2.bf16.xpose.msra.mxu0 0
        %1097 = vmatprep.subr.bf16.mxu0 0
        %1098 = vmatpush2.bf16.xpose.msra.mxu0 0
        %1099 = vmatprep.subr.bf16.mxu0 0
        %1100 = vmatpush2.bf16.xpose.msra.mxu0 0
        %1101 = vmatprep.subr.bf16.mxu0 0
        %1102 = vmatpush2.bf16.xpose.msra.mxu0 0
        %1103 = vmatprep.subr.bf16.mxu0 0
        %1104 = vmatpush2.bf16.xpose.msra.mxu0 0
        %1105 = vmatprep.subr.bf16.mxu0 0
        %1106 = vmatpush2.bf16.xpose.msra.mxu0 0
        %1107 = vmatprep.subr.bf16.mxu0 0
        %1108 = vmatpush2.bf16.xpose.msra.mxu0 0
        %1109 = vmatprep.mubr.bf16.mxu0 0
        %1110 = vmatmul.mubr.bf16.gmra.mxu0 %v1072
        %v1111 = vpop.f32.mrf.mxu0
        %v1112 = vadd.f32 0.0, %v1111
        %v1113 = vpop.f32.mrf.mxu0
        %v1114 = vpop.f32.mrf.mxu0
        %v1115 = vpop.f32.mrf.mxu0
        %1116 = vdwg.mxu0
        %v1118 = vsel %vm978, %v969, 0
        %v1121 = vsel %vm978, %v973, 0
        %1123 = vmatprep.subr.bf16.mxu0 0
        %1124 = vmatpush1.bf16.xpose.msra.mxu0 0
        %1125 = vmatprep.subr.bf16.mxu0 0
        %1126 = vmatpush1.bf16.xpose.msra.mxu0 0
        %1127 = vmatprep.subr.bf16.mxu0 0
        %1128 = vmatpush1.bf16.xpose.msra.mxu0 0
        %1129 = vmatprep.subr.bf16.mxu0 0
        %1130 = vmatpush1.bf16.xpose.msra.mxu0 0
        %1131 = vmatprep.subr.bf16.mxu0 0
        %1132 = vmatpush1.bf16.xpose.msra.mxu0 0
        %1133 = vmatprep.subr.bf16.mxu0 0
        %1134 = vmatpush1.bf16.xpose.msra.mxu0 0
        %1135 = vmatprep.subr.bf16.mxu0 0
        %1136 = vmatpush1.bf16.xpose.msra.mxu0 0
        %1137 = vmatprep.subr.bf16.mxu0 0
        %1138 = vmatpush1.bf16.xpose.msra.mxu0 %v1121
        %1139 = vmatprep.subr.bf16.mxu0 0
        %1140 = vmatpush2.bf16.xpose.msra.mxu0 0
        %1141 = vmatprep.subr.bf16.mxu0 0
        %1142 = vmatpush2.bf16.xpose.msra.mxu0 0
        %1143 = vmatprep.subr.bf16.mxu0 0
        %1144 = vmatpush2.bf16.xpose.msra.mxu0 0
        %1145 = vmatprep.subr.bf16.mxu0 0
        %1146 = vmatpush2.bf16.xpose.msra.mxu0 0
        %1147 = vmatprep.subr.bf16.mxu0 0
        %1148 = vmatpush2.bf16.xpose.msra.mxu0 0
        %1149 = vmatprep.subr.bf16.mxu0 0
        %1150 = vmatpush2.bf16.xpose.msra.mxu0 0
        %1151 = vmatprep.subr.bf16.mxu0 0
        %1152 = vmatpush2.bf16.xpose.msra.mxu0 0
        %1153 = vmatprep.subr.bf16.mxu0 0
        %1154 = vmatpush2.bf16.xpose.msra.mxu0 0
        %1155 = vmatprep.mubr.bf16.mxu0 0
        %1156 = vmatmul.mubr.bf16.gmra.mxu0 %v1118
        %v1157 = vpop.f32.mrf.mxu0
        %v1158 = vadd.f32 0.0, %v1157
        %v1159 = vpop.f32.mrf.mxu0
        %v1160 = vpop.f32.mrf.mxu0
        %v1161 = vpop.f32.mrf.mxu0
        %1162 = vdwg.mxu0
        %vm1163 = vcmp.gt.f32.partialorder %v739, 0.5
        %v1164 = vsel %vm1163, 1, 0
        %vm1165 = vcmp.eq.s32.totalorder %v1164, 1
        %v1166 = vsel %vm1165, -1e+30, %v1020
        %v1167 = vsel %vm1165, -1e+30, %v1066
        %v1168 = vsel %vm1165, -1e+30, %v1112
        %v1169 = vsel %vm1165, -1e+30, %v1158
        %v1170 = vsel %vm978, %v1166, -inf
        %1171 = vmax.xlane.f32.xlu0 %v1170
        %v1172 = vpop.xlane.xlu0 %1171
        %v1173 = vsel %vm978, %v1167, -inf
        %1174 = vmax.xlane.f32.xlu0 %v1173
        %v1175 = vpop.xlane.xlu0 %1174
        %v1176 = vsel %vm978, %v1168, -inf
        %1177 = vmax.xlane.f32.xlu0 %v1176
        %v1178 = vpop.xlane.xlu0 %1177
        %v1179 = vsel %vm978, %v1169, -inf
        %1180 = vmax.xlane.f32.xlu0 %v1179
        %v1181 = vpop.xlane.xlu0 %1180
        %v1182 = vsub.f32 %v1166, %v1172
        %v1183 = vsub.f32 %v1167, %v1175
        %v1184 = vsub.f32 %v1168, %v1178
        %v1185 = vsub.f32 %v1169, %v1181
        %v1186 = vmul.f32 %v1182, 1.442695
        %v1187 = vpow.pop %v1186
        %v1188 = vmul.f32 %v1183, 1.442695
        %v1189 = vpow.pop %v1188
        %v1190 = vmul.f32 %v1184, 1.442695
        %v1191 = vpow.pop %v1190
        %v1192 = vmul.f32 %v1185, 1.442695
        %v1193 = vpow.pop %v1192
        %v1194 = vsel %vm978, %v1187, 0.0
        %1195 = vadd.xlane.f32.xlu0 %v1194
        %v1196 = vpop.xlane.xlu0 %1195
        %v1197 = vsel %vm978, %v1189, 0.0
        %1198 = vadd.xlane.f32.xlu0 %v1197
        %v1199 = vpop.xlane.xlu0 %1198
        %v1200 = vsel %vm978, %v1191, 0.0
        %1201 = vadd.xlane.f32.xlu0 %v1200
        %v1202 = vpop.xlane.xlu0 %1201
        %v1203 = vsel %vm978, %v1193, 0.0
        %1204 = vadd.xlane.f32.xlu0 %v1203
        %v1205 = vpop.xlane.xlu0 %1204
        %v1206 = vrcp.pop %v1196
        %v1207 = vrcp.pop %v1199
        %v1208 = vrcp.pop %v1202
        %v1209 = vrcp.pop %v1205
        %v1210 = vmul.f32 %v1187, %v1206
        %v1211 = vmul.f32 %v1189, %v1207
        %v1212 = vmul.f32 %v1191, %v1208
        %v1213 = vmul.f32 %v1193, %v1209
        %1214 = vst.msk [vmem:[%s724] sm:$0xff] %vm978, %v1210
        %1215 = vst.msk [vmem:[%s724 + $0x8] sm:$0xff] %vm978, %v1211
        %1216 = vst.msk [vmem:[%s724 + $0x10] sm:$0xff] %vm978, %v1212
        %1217 = vst.msk [vmem:[%s724 + $0x18] sm:$0xff] %vm978, %v1213
        %v1218 = vpack.c.bf16 %v1210, %v1210
        %v1219 = vpack.c.bf16 %v1211, %v1211
        %v1220 = vpack.c.bf16 %v1212, %v1212
        %v1221 = vpack.c.bf16 %v1213, %v1213
        %v1223 = vsel %vm978, %v1218, 0
        %vm1225 = vcmask 1043456
        %v1227 = vsel %vm1225, %v974, 0
        %1229 = vmatprep.subr.bf16.mxu0 0
        %1230 = vmatpush1.bf16.msra.mxu0 0
        %1231 = vmatprep.subr.bf16.mxu0 0
        %1232 = vmatpush1.bf16.msra.mxu0 0
        %1233 = vmatprep.subr.bf16.mxu0 0
        %1234 = vmatpush1.bf16.msra.mxu0 0
        %1235 = vmatprep.subr.bf16.mxu0 0
        %1236 = vmatpush1.bf16.msra.mxu0 0
        %1237 = vmatprep.subr.bf16.mxu0 0
        %1238 = vmatpush1.bf16.msra.mxu0 0
        %1239 = vmatprep.subr.bf16.mxu0 0
        %1240 = vmatpush1.bf16.msra.mxu0 0
        %1241 = vmatprep.subr.bf16.mxu0 0
        %1242 = vmatpush1.bf16.msra.mxu0 0
        %1243 = vmatprep.subr.bf16.mxu0 0
        %1244 = vmatpush1.bf16.msra.mxu0 %v1227
        %1245 = vmatprep.subr.bf16.mxu0 0
        %1246 = vmatpush2.bf16.msra.mxu0 0
        %1247 = vmatprep.subr.bf16.mxu0 0
        %1248 = vmatpush2.bf16.msra.mxu0 0
        %1249 = vmatprep.subr.bf16.mxu0 0
        %1250 = vmatpush2.bf16.msra.mxu0 0
        %1251 = vmatprep.subr.bf16.mxu0 0
        %1252 = vmatpush2.bf16.msra.mxu0 0
        %1253 = vmatprep.subr.bf16.mxu0 0
        %1254 = vmatpush2.bf16.msra.mxu0 0
        %1255 = vmatprep.subr.bf16.mxu0 0
        %1256 = vmatpush2.bf16.msra.mxu0 0
        %1257 = vmatprep.subr.bf16.mxu0 0
        %1258 = vmatpush2.bf16.msra.mxu0 0
        %1259 = vmatprep.subr.bf16.mxu0 0
        %1260 = vmatpush2.bf16.msra.mxu0 0
        %1261 = vmatprep.mubr.bf16.mxu0 0
        %1262 = vmatmul.mubr.bf16.gmra.mxu0 %v1223
        %v1263 = vpop.f32.mrf.mxu0
        %v1264 = vadd.f32 0.0, %v1263
        %v1265 = vpop.f32.mrf.mxu0
        %v1266 = vpop.f32.mrf.mxu0
        %v1267 = vpop.f32.mrf.mxu0
        %1268 = vdwg.mxu0
        %v1270 = vsel %vm978, %v1219, 0
        %v1273 = vsel %vm1225, %v975, 0
        %1275 = vmatprep.subr.bf16.mxu0 0
        %1276 = vmatpush1.bf16.msra.mxu0 0
        %1277 = vmatprep.subr.bf16.mxu0 0
        %1278 = vmatpush1.bf16.msra.mxu0 0
        %1279 = vmatprep.subr.bf16.mxu0 0
        %1280 = vmatpush1.bf16.msra.mxu0 0
        %1281 = vmatprep.subr.bf16.mxu0 0
        %1282 = vmatpush1.bf16.msra.mxu0 0
        %1283 = vmatprep.subr.bf16.mxu0 0
        %1284 = vmatpush1.bf16.msra.mxu0 0
        %1285 = vmatprep.subr.bf16.mxu0 0
        %1286 = vmatpush1.bf16.msra.mxu0 0
        %1287 = vmatprep.subr.bf16.mxu0 0
        %1288 = vmatpush1.bf16.msra.mxu0 0
        %1289 = vmatprep.subr.bf16.mxu0 0
        %1290 = vmatpush1.bf16.msra.mxu0 %v1273
        %1291 = vmatprep.subr.bf16.mxu0 0
        %1292 = vmatpush2.bf16.msra.mxu0 0
        %1293 = vmatprep.subr.bf16.mxu0 0
        %1294 = vmatpush2.bf16.msra.mxu0 0
        %1295 = vmatprep.subr.bf16.mxu0 0
        %1296 = vmatpush2.bf16.msra.mxu0 0
        %1297 = vmatprep.subr.bf16.mxu0 0
        %1298 = vmatpush2.bf16.msra.mxu0 0
        %1299 = vmatprep.subr.bf16.mxu0 0
        %1300 = vmatpush2.bf16.msra.mxu0 0
        %1301 = vmatprep.subr.bf16.mxu0 0
        %1302 = vmatpush2.bf16.msra.mxu0 0
        %1303 = vmatprep.subr.bf16.mxu0 0
        %1304 = vmatpush2.bf16.msra.mxu0 0
        %1305 = vmatprep.subr.bf16.mxu0 0
        %1306 = vmatpush2.bf16.msra.mxu0 0
        %1307 = vmatprep.mubr.bf16.mxu0 0
        %1308 = vmatmul.mubr.bf16.gmra.mxu0 %v1270
        %v1309 = vpop.f32.mrf.mxu0
        %v1310 = vadd.f32 0.0, %v1309
        %v1311 = vpop.f32.mrf.mxu0
        %v1312 = vpop.f32.mrf.mxu0
        %v1313 = vpop.f32.mrf.mxu0
        %1314 = vdwg.mxu0
        %v1316 = vsel %vm978, %v1220, 0
        %v1319 = vsel %vm1225, %v976, 0
        %1321 = vmatprep.subr.bf16.mxu0 0
        %1322 = vmatpush1.bf16.msra.mxu0 0
        %1323 = vmatprep.subr.bf16.mxu0 0
        %1324 = vmatpush1.bf16.msra.mxu0 0
        %1325 = vmatprep.subr.bf16.mxu0 0
        %1326 = vmatpush1.bf16.msra.mxu0 0
        %1327 = vmatprep.subr.bf16.mxu0 0
        %1328 = vmatpush1.bf16.msra.mxu0 0
        %1329 = vmatprep.subr.bf16.mxu0 0
        %1330 = vmatpush1.bf16.msra.mxu0 0
        %1331 = vmatprep.subr.bf16.mxu0 0
        %1332 = vmatpush1.bf16.msra.mxu0 0
        %1333 = vmatprep.subr.bf16.mxu0 0
        %1334 = vmatpush1.bf16.msra.mxu0 0
        %1335 = vmatprep.subr.bf16.mxu0 0
        %1336 = vmatpush1.bf16.msra.mxu0 %v1319
        %1337 = vmatprep.subr.bf16.mxu0 0
        %1338 = vmatpush2.bf16.msra.mxu0 0
        %1339 = vmatprep.subr.bf16.mxu0 0
        %1340 = vmatpush2.bf16.msra.mxu0 0
        %1341 = vmatprep.subr.bf16.mxu0 0
        %1342 = vmatpush2.bf16.msra.mxu0 0
        %1343 = vmatprep.subr.bf16.mxu0 0
        %1344 = vmatpush2.bf16.msra.mxu0 0
        %1345 = vmatprep.subr.bf16.mxu0 0
        %1346 = vmatpush2.bf16.msra.mxu0 0
        %1347 = vmatprep.subr.bf16.mxu0 0
        %1348 = vmatpush2.bf16.msra.mxu0 0
        %1349 = vmatprep.subr.bf16.mxu0 0
        %1350 = vmatpush2.bf16.msra.mxu0 0
        %1351 = vmatprep.subr.bf16.mxu0 0
        %1352 = vmatpush2.bf16.msra.mxu0 0
        %1353 = vmatprep.mubr.bf16.mxu0 0
        %1354 = vmatmul.mubr.bf16.gmra.mxu0 %v1316
        %v1355 = vpop.f32.mrf.mxu0
        %v1356 = vadd.f32 0.0, %v1355
        %v1357 = vpop.f32.mrf.mxu0
        %v1358 = vpop.f32.mrf.mxu0
        %v1359 = vpop.f32.mrf.mxu0
        %1360 = vdwg.mxu0
        %v1362 = vsel %vm978, %v1221, 0
        %v1365 = vsel %vm1225, %v977, 0
        %1367 = vmatprep.subr.bf16.mxu0 0
        %1368 = vmatpush1.bf16.msra.mxu0 0
        %1369 = vmatprep.subr.bf16.mxu0 0
        %1370 = vmatpush1.bf16.msra.mxu0 0
        %1371 = vmatprep.subr.bf16.mxu0 0
        %1372 = vmatpush1.bf16.msra.mxu0 0
        %1373 = vmatprep.subr.bf16.mxu0 0
        %1374 = vmatpush1.bf16.msra.mxu0 0
        %1375 = vmatprep.subr.bf16.mxu0 0
        %1376 = vmatpush1.bf16.msra.mxu0 0
        %1377 = vmatprep.subr.bf16.mxu0 0
        %1378 = vmatpush1.bf16.msra.mxu0 0
        %1379 = vmatprep.subr.bf16.mxu0 0
        %1380 = vmatpush1.bf16.msra.mxu0 0
        %1381 = vmatprep.subr.bf16.mxu0 0
        %1382 = vmatpush1.bf16.msra.mxu0 %v1365
        %1383 = vmatprep.subr.bf16.mxu0 0
        %1384 = vmatpush2.bf16.msra.mxu0 0
        %1385 = vmatprep.subr.bf16.mxu0 0
        %1386 = vmatpush2.bf16.msra.mxu0 0
        %1387 = vmatprep.subr.bf16.mxu0 0
        %1388 = vmatpush2.bf16.msra.mxu0 0
        %1389 = vmatprep.subr.bf16.mxu0 0
        %1390 = vmatpush2.bf16.msra.mxu0 0
        %1391 = vmatprep.subr.bf16.mxu0 0
        %1392 = vmatpush2.bf16.msra.mxu0 0
        %1393 = vmatprep.subr.bf16.mxu0 0
        %1394 = vmatpush2.bf16.msra.mxu0 0
        %1395 = vmatprep.subr.bf16.mxu0 0
        %1396 = vmatpush2.bf16.msra.mxu0 0
        %1397 = vmatprep.subr.bf16.mxu0 0
        %1398 = vmatpush2.bf16.msra.mxu0 0
        %1399 = vmatprep.mubr.bf16.mxu0 0
        %1400 = vmatmul.mubr.bf16.gmra.mxu0 %v1362
        %v1401 = vpop.f32.mrf.mxu0
        %v1402 = vadd.f32 0.0, %v1401
        %v1403 = vpop.f32.mrf.mxu0
        %v1404 = vpop.f32.mrf.mxu0
        %v1405 = vpop.f32.mrf.mxu0
        %1406 = vdwg.mxu0
        %1408 = vrot.lane.b32.xlu0 %v1310, 8
        %v1409 = vpop.permute.xlu0 %1408
        %1412 = vrot.lane.b32.xlu0 %v1356, 16
        %v1413 = vpop.permute.xlu0 %1412
        %1416 = vrot.lane.b32.xlu0 %v1402, 24
        %v1417 = vpop.permute.xlu0 %1416
        %v1419 = vsel %vm978, %v1264, %v1409
        %vm1420 = vcmask 130048
        %v1421 = vsel %vm1420, %v1419, %v1413
        %vm1422 = vcmask 195584
        %v1423 = vsel %vm1422, %v1421, %v1417
        %v1424 = vpack.c.bf16 %v1423, %v1423
        %v1425 = vld [vmem:[%s9] sm:$0xf]
        %v1426 = vld [vmem:[%s9 + $0x4] sm:$0xf]
        %v1427 = vld [vmem:[%s9 + $0x8] sm:$0xf]
        %v1428 = vld [vmem:[%s9 + $0xc] sm:$0xf]
        %v1429 = vld [vmem:[%s10] sm:$0x1]
        %v1431 = vlaneseq
        %v1432 = vshrl.u32 %v1431, 7
        %v1433 = vsub.s32 0, %v1432
        %v1434 = vrot.slane %v1429, %v1433
        %v1440 = vunpack.c.l.b16 %v1425
        %v1441 = vunpack.c.l.b16 %v1426
        %v1442 = vunpack.c.l.b16 %v1427
        %v1443 = vunpack.c.l.b16 %v1428
        %v1444 = vpack.c.b16 %v1441, %v1440
        %v1445 = vpack.c.b16 %v1443, %v1442
        %v1449 = vsel %vm765, %v1424, 0
        %1451 = vmatprep.subr.bf16.mxu0 0
        %1452 = vmatpush1.bf16.msra.mxu0 0
        %1453 = vmatprep.subr.bf16.mxu0 0
        %1454 = vmatpush1.bf16.msra.mxu0 0
        %1455 = vmatprep.subr.bf16.mxu0 0
        %1456 = vmatpush1.bf16.msra.mxu0 0
        %1457 = vmatprep.subr.bf16.mxu0 0
        %1458 = vmatpush1.bf16.msra.mxu0 0
        %1459 = vmatprep.subr.bf16.mxu0 0
        %1460 = vmatpush1.bf16.msra.mxu0 0
        %1461 = vmatprep.subr.bf16.mxu0 0
        %1462 = vmatpush1.bf16.msra.mxu0 0
        %1463 = vmatprep.subr.bf16.mxu0 0
        %1464 = vmatpush1.bf16.msra.mxu0 %v1445
        %1465 = vmatprep.subr.bf16.mxu0 0
        %1466 = vmatpush1.bf16.msra.mxu0 %v1444
        %1467 = vmatprep.subr.bf16.mxu0 0
        %1468 = vmatpush2.bf16.msra.mxu0 0
        %1469 = vmatprep.subr.bf16.mxu0 0
        %1470 = vmatpush2.bf16.msra.mxu0 0
        %1471 = vmatprep.subr.bf16.mxu0 0
        %1472 = vmatpush2.bf16.msra.mxu0 0
        %1473 = vmatprep.subr.bf16.mxu0 0
        %1474 = vmatpush2.bf16.msra.mxu0 0
        %1475 = vmatprep.subr.bf16.mxu0 0
        %1476 = vmatpush2.bf16.msra.mxu0 0
        %1477 = vmatprep.subr.bf16.mxu0 0
        %1478 = vmatpush2.bf16.msra.mxu0 0
        %1479 = vmatprep.subr.bf16.mxu0 0
        %1480 = vmatpush2.bf16.msra.mxu0 0
        %1481 = vmatprep.subr.bf16.mxu0 0
        %1482 = vmatpush2.bf16.msra.mxu0 0
        %1483 = vmatprep.mubr.bf16.mxu0 0
        %1484 = vmatmul.mubr.bf16.gmra.mxu0 %v1449
        %v1485 = vpop.f32.mrf.mxu0
        %v1486 = vadd.f32 %v1434, %v1485
        %v1487 = vpop.f32.mrf.mxu0
        %v1488 = vpop.f32.mrf.mxu0
        %v1489 = vpop.f32.mrf.mxu0
        %1490 = vdwg.mxu0
        %v1491 = vadd.f32 %v1486, %v738
        %v1492 = vld [vmem:[%s11] sm:$0x1]
        %v1493 = vld [vmem:[%s12] sm:$0x1]
        %v1494 = vsel %vm765, %v1491, 0.0
        %1495 = vadd.xlane.f32.xlu0 %v1494
        %v1496 = vpop.xlane.xlu0 %1495
        %v1497 = vrcp.pop 32.0
        %v1498 = vmul.f32 %v1496, %v1497
        %v1499 = vsub.f32 %v1491, %v1498
        %v1500 = vmul.f32 %v1499, %v1499
        %v1501 = vsel %vm765, %v1500, 0.0
        %1502 = vadd.xlane.f32.xlu0 %v1501
        %v1503 = vpop.xlane.xlu0 %1502
        %v1504 = vmul.f32 %v1503, %v1497
        %v1505 = vadd.f32 %v1504, 1e-05
        %v1506 = vrsqrt.pop %v1505
        %v1507 = vmul.f32 %v1499, %v1506
        %v1509 = vlaneseq
        %v1510 = vshrl.u32 %v1509, 7
        %v1511 = vsub.s32 0, %v1510
        %v1512 = vrot.slane %v1492, %v1511
        %v1514 = vmul.f32 %v1507, %v1512
        %v1516 = vlaneseq
        %v1517 = vshrl.u32 %v1516, 7
        %v1518 = vsub.s32 0, %v1517
        %v1519 = vrot.slane %v1493, %v1518
        %v1521 = vadd.f32 %v1514, %v1519
        %1523 = vset.pattern.permute.xlu0 0
        %1524 = vperm.xlu0 %1523, %v740
        %v1525 = vpop.permute.xlu0 %1524
        %v1527 = vmul.f32 %v1521, %v1525
        %v1528 = vpack.c.bf16 %v1527, %v1527
        %v1529 = vld [vmem:[#allocation10] sm:$0xf]
        %v1530 = vld [vmem:[#allocation10 + $0x4] sm:$0xf]
        %v1531 = vld [vmem:[#allocation10 + $0x8] sm:$0xf]
        %v1532 = vld [vmem:[#allocation10 + $0xc] sm:$0xf]
        %v1533 = vld [vmem:[%s14] sm:$0x1]
        %v1535 = vlaneseq
        %v1536 = vshrl.u32 %v1535, 7
        %v1537 = vsub.s32 0, %v1536
        %v1538 = vrot.slane %v1533, %v1537
        %v1544 = vunpack.c.l.b16 %v1529
        %v1545 = vunpack.c.l.b16 %v1530
        %v1546 = vunpack.c.l.b16 %v1531
        %v1547 = vunpack.c.l.b16 %v1532
        %v1548 = vpack.c.b16 %v1545, %v1544
        %v1549 = vpack.c.b16 %v1547, %v1546
        %v1553 = vsel %vm765, %v1528, 0
        %1555 = vmatprep.subr.bf16.mxu0 0
        %1556 = vmatpush1.bf16.msra.mxu0 0
        %1557 = vmatprep.subr.bf16.mxu0 0
        %1558 = vmatpush1.bf16.msra.mxu0 0
        %1559 = vmatprep.subr.bf16.mxu0 0
        %1560 = vmatpush1.bf16.msra.mxu0 0
        %1561 = vmatprep.subr.bf16.mxu0 0
        %1562 = vmatpush1.bf16.msra.mxu0 0
        %1563 = vmatprep.subr.bf16.mxu0 0
        %1564 = vmatpush1.bf16.msra.mxu0 0
        %1565 = vmatprep.subr.bf16.mxu0 0
        %1566 = vmatpush1.bf16.msra.mxu0 0
        %1567 = vmatprep.subr.bf16.mxu0 0
        %1568 = vmatpush1.bf16.msra.mxu0 %v1549
        %1569 = vmatprep.subr.bf16.mxu0 0
        %1570 = vmatpush1.bf16.msra.mxu0 %v1548
        %1571 = vmatprep.subr.bf16.mxu0 0
        %1572 = vmatpush2.bf16.msra.mxu0 0
        %1573 = vmatprep.subr.bf16.mxu0 0
        %1574 = vmatpush2.bf16.msra.mxu0 0
        %1575 = vmatprep.subr.bf16.mxu0 0
        %1576 = vmatpush2.bf16.msra.mxu0 0
        %1577 = vmatprep.subr.bf16.mxu0 0
        %1578 = vmatpush2.bf16.msra.mxu0 0
        %1579 = vmatprep.subr.bf16.mxu0 0
        %1580 = vmatpush2.bf16.msra.mxu0 0
        %1581 = vmatprep.subr.bf16.mxu0 0
        %1582 = vmatpush2.bf16.msra.mxu0 0
        %1583 = vmatprep.subr.bf16.mxu0 0
        %1584 = vmatpush2.bf16.msra.mxu0 0
        %1585 = vmatprep.subr.bf16.mxu0 0
        %1586 = vmatpush2.bf16.msra.mxu0 0
        %1587 = vmatprep.mubr.bf16.mxu0 0
        %1588 = vmatmul.mubr.bf16.gmra.mxu0 %v1553
        %v1589 = vpop.f32.mrf.mxu0
        %v1590 = vadd.f32 %v1538, %v1589
        %v1591 = vpop.f32.mrf.mxu0
        %v1592 = vpop.f32.mrf.mxu0
        %v1593 = vpop.f32.mrf.mxu0
        %1594 = vdwg.mxu0
        %v1595 = vmax.f32 %v1590, 0.0
        %v1596 = vpack.c.bf16 %v1595, %v1595
        %v1597 = vld [vmem:[%s15] sm:$0xf]
        %v1598 = vld [vmem:[%s15 + $0x4] sm:$0xf]
        %v1599 = vld [vmem:[%s15 + $0x8] sm:$0xf]
        %v1600 = vld [vmem:[%s15 + $0xc] sm:$0xf]
        %v1601 = vld [vmem:[%s15 + $0x10] sm:$0xf]
        %v1602 = vld [vmem:[%s15 + $0x14] sm:$0xf]
        %v1603 = vld [vmem:[%s15 + $0x18] sm:$0xf]
        %v1604 = vld [vmem:[%s15 + $0x1c] sm:$0xf]
        %v1605 = vld [vmem:[%s16] sm:$0x1]
        %v1607 = vlaneseq
        %v1608 = vshrl.u32 %v1607, 7
        %v1609 = vsub.s32 0, %v1608
        %v1610 = vrot.slane %v1605, %v1609
        %v1620 = vunpack.c.l.b16 %v1597
        %v1621 = vunpack.c.l.b16 %v1598
        %v1622 = vunpack.c.l.b16 %v1599
        %v1623 = vunpack.c.l.b16 %v1600
        %v1624 = vunpack.c.l.b16 %v1601
        %v1625 = vunpack.c.l.b16 %v1602
        %v1626 = vunpack.c.l.b16 %v1603
        %v1627 = vunpack.c.l.b16 %v1604
        %v1628 = vpack.c.b16 %v1621, %v1620
        %v1629 = vpack.c.b16 %v1623, %v1622
        %v1630 = vpack.c.b16 %v1625, %v1624
        %v1631 = vpack.c.b16 %v1627, %v1626
        %vm1636 = vcmask 523264
        %v1638 = vsel %vm1636, %v1596, 0
        %1640 = vmatprep.subr.bf16.mxu0 0
        %1641 = vmatpush1.bf16.msra.mxu0 0
        %1642 = vmatprep.subr.bf16.mxu0 0
        %1643 = vmatpush1.bf16.msra.mxu0 0
        %1644 = vmatprep.subr.bf16.mxu0 0
        %1645 = vmatpush1.bf16.msra.mxu0 0
        %1646 = vmatprep.subr.bf16.mxu0 0
        %1647 = vmatpush1.bf16.msra.mxu0 0
        %1648 = vmatprep.subr.bf16.mxu0 0
        %1649 = vmatpush1.bf16.msra.mxu0 %v1631
        %1650 = vmatprep.subr.bf16.mxu0 0
        %1651 = vmatpush1.bf16.msra.mxu0 %v1630
        %1652 = vmatprep.subr.bf16.mxu0 0
        %1653 = vmatpush1.bf16.msra.mxu0 %v1629
        %1654 = vmatprep.subr.bf16.mxu0 0
        %1655 = vmatpush1.bf16.msra.mxu0 %v1628
        %1656 = vmatprep.subr.bf16.mxu0 0
        %1657 = vmatpush2.bf16.msra.mxu0 0
        %1658 = vmatprep.subr.bf16.mxu0 0
        %1659 = vmatpush2.bf16.msra.mxu0 0
        %1660 = vmatprep.subr.bf16.mxu0 0
        %1661 = vmatpush2.bf16.msra.mxu0 0
        %1662 = vmatprep.subr.bf16.mxu0 0
        %1663 = vmatpush2.bf16.msra.mxu0 0
        %1664 = vmatprep.subr.bf16.mxu0 0
        %1665 = vmatpush2.bf16.msra.mxu0 0
        %1666 = vmatprep.subr.bf16.mxu0 0
        %1667 = vmatpush2.bf16.msra.mxu0 0
        %1668 = vmatprep.subr.bf16.mxu0 0
        %1669 = vmatpush2.bf16.msra.mxu0 0
        %1670 = vmatprep.subr.bf16.mxu0 0
        %1671 = vmatpush2.bf16.msra.mxu0 0
        %1672 = vmatprep.mubr.bf16.mxu0 0
        %1673 = vmatmul.mubr.bf16.gmra.mxu0 %v1638
        %v1674 = vpop.f32.mrf.mxu0
        %v1675 = vadd.f32 %v1610, %v1674
        %v1676 = vpop.f32.mrf.mxu0
        %v1677 = vpop.f32.mrf.mxu0
        %v1678 = vpop.f32.mrf.mxu0
        %1679 = vdwg.mxu0
        %v1680 = vadd.f32 %v1675, %v1527
        %v1681 = vld [vmem:[%s17] sm:$0x1]
        %v1682 = vld [vmem:[%s18] sm:$0x1]
        %v1683 = vsel %vm765, %v1680, 0.0
        %1684 = vadd.xlane.f32.xlu0 %v1683
        %v1685 = vpop.xlane.xlu0 %1684
        %v1686 = vmul.f32 %v1685, %v1497
        %v1687 = vsub.f32 %v1680, %v1686
        %v1688 = vmul.f32 %v1687, %v1687
        %v1689 = vsel %vm765, %v1688, 0.0
        %1690 = vadd.xlane.f32.xlu0 %v1689
        %v1691 = vpop.xlane.xlu0 %1690
        %v1692 = vmul.f32 %v1691, %v1497
        %v1693 = vadd.f32 %v1692, 1e-05
        %v1694 = vrsqrt.pop %v1693
        %v1695 = vmul.f32 %v1687, %v1694
        %v1697 = vlaneseq
        %v1698 = vshrl.u32 %v1697, 7
        %v1699 = vsub.s32 0, %v1698
        %v1700 = vrot.slane %v1681, %v1699
        %v1702 = vmul.f32 %v1695, %v1700
        %v1704 = vlaneseq
        %v1705 = vshrl.u32 %v1704, 7
        %v1706 = vsub.s32 0, %v1705
        %v1707 = vrot.slane %v1682, %v1706
        %v1709 = vadd.f32 %v1702, %v1707
        %v1710 = vmul.f32 %v1709, %v1525
        %1711 = vst.msk [vmem:[%s717] sm:$0xff] %vm765, %v1710
        %s1712 = sand.u32 %s463, 1
        %s1713 = scalar_lea.sflag [#allocation4], %s1712
        %s1714 = sand.u32 %s463, 1
        %s1715 = smul.addr %s1714, 8
        %s1716 = scalar_lea.vmem [#allocation11], %s1715
        %s1717 = sand.u32 %s489, 1
        %s1718 = scalar_lea.sflag [#allocation13], %s1717
        %s1719 = sand.u32 %s489, 1
        %s1720 = smul.addr %s1719, 32
        %s1721 = scalar_lea.vmem [#allocation12], %s1720
        // Predicated region
        $region117: #{tpu_custom_call.1} parent=95 // pred_check
          %p1722 = pneg %p473
        $region118: #{tpu_custom_call.1} parent=95 // pred_check_branch
          %1724 = sbr.rel (%p1722) target = $region120
        $region119: #{tpu_custom_call.1} parent=95 // pred_region
          %s1726 = ssub.s32 128, 128
          %1727 = vsyncadd %s1713, %s1726
          %s1728 = smul.addr %s41, 128
          %s1729 = scalar_lea.hbm %s19, %s1728
          %s1731 = sshll.u32 %s1716, 4
          %s1732 = int_to_ptr.vmem [resolvable:$true] %s1731
          %1734 = dma.vmem_to_hbm [thread:$0]  %s1732, 128, %s1729, %s1713
        $region120: #{tpu_custom_call.1} parent=95 // pred_fallthru
          _
        // Predicated region
        $region121: #{tpu_custom_call.1} parent=95 // pred_check
          %p1735 = pneg %p499
        $region122: #{tpu_custom_call.1} parent=95 // pred_check_branch
          %1737 = sbr.rel (%p1735) target = $region124
        $region123: #{tpu_custom_call.1} parent=95 // pred_region
          %s1739 = ssub.s32 512, 512
          %1740 = vsyncadd %s1718, %s1739
          %s1741 = smul.addr %s41, 128
          %s1742 = scalar_lea.hbm %s20, %s1741
          %s1743 = sshll.u32 %s1721, 4
          %s1744 = int_to_ptr.vmem [resolvable:$true] %s1743
          %1749 = dma.vmem_to_hbm [thread:$0]  %s1744, 512, %s1742, %s1718, 128, 256, 8
        $region124: #{tpu_custom_call.1} parent=95 // pred_fallthru
          _
      $region96: #{tpu_custom_call.1} parent=5 // pred_fallthru
        _
      %p1750 = scmp.le.s32.totalorder 2, %s36
      // Predicated region
      $region125: #{tpu_custom_call.1} parent=5 // pred_check
        %p1751 = pneg %p1750
      $region126: #{tpu_custom_call.1} parent=5 // pred_check_branch
        %1753 = sbr.rel (%p1751) target = $region128
      $region127: #{tpu_custom_call.1} parent=5 // pred_region
        %s1754 = ssub.s32 %s36, 2
        // Predicated region
        $region129: #{tpu_custom_call.1} parent=127 // pred_check
          %p1755 = pneg %p479
        $region130: #{tpu_custom_call.1} parent=127 // pred_check_branch
          %1757 = sbr.rel (%p1755) target = $region132
        $region131: #{tpu_custom_call.1} parent=127 // pred_region
          %s1758 = sand.u32 %s464, 1
          %s1759 = scalar_lea.sflag [#allocation4], %s1758
          %s1760 = sand.u32 %s464, 1
          %s1761 = smul.addr %s1760, 8
          %s1762 = scalar_lea.vmem [#allocation11], %s1761
          %1763 = dma.done %s1759, 128
        $region132: #{tpu_custom_call.1} parent=127 // pred_fallthru
          _
        // Predicated region
        $region133: #{tpu_custom_call.1} parent=127 // pred_check
          %p1764 = pneg %p505
        $region134: #{tpu_custom_call.1} parent=127 // pred_check_branch
          %1766 = sbr.rel (%p1764) target = $region136
        $region135: #{tpu_custom_call.1} parent=127 // pred_region
          %s1767 = sand.u32 %s490, 1
          %s1768 = scalar_lea.sflag [#allocation13], %s1767
          %s1769 = sand.u32 %s490, 1
          %s1770 = smul.addr %s1769, 32
          %s1771 = scalar_lea.vmem [#allocation12], %s1770
          %1772 = dma.done %s1768, 512
        $region136: #{tpu_custom_call.1} parent=127 // pred_fallthru
          _
      $region128: #{tpu_custom_call.1} parent=5 // pred_fallthru
        _
    $region6: #{tpu_custom_call.1} parent=1 // loop_footer
      %s40 = sadd.s32 1, %s36
    $region7: #{tpu_custom_call.1} parent=1 // loop_footer_branch
      %35 = sbr.rel target = $region3
    $region8: #{tpu_custom_call.1} parent=1 // loop_exit
      _
    %1773 = vsyncpa [#allocation3], 1
    %s1774 = scalar_lea.sflag [#allocation3], 1
    %1775 = vsyncpa %s1774, 1
    %1776 = vsyncpa [#allocation6], 1
    %1777 = vsyncpa [#allocation9], 1
    %1778 = vsyncpa [#allocation4], 1
    %s1779 = scalar_lea.sflag [#allocation4], 1
    %1780 = vsyncpa %s1779, 1
    %1781 = vsyncpa [#allocation13], 1
    %s1782 = scalar_lea.sflag [#allocation13], 1
    %1783 = vsyncpa %s1782, 1

</llo_original>
